<compile_context>
chip_gen: v7x
topology: tpu7x:2x2x1
jax: 0.10.0
libtpu: 0.0.40
codegen_flags: <defaults>
</compile_context>

<pallas_src>
import functools

import jax
import jax.numpy as jnp
from jax.experimental import pallas as pl
from jax.experimental.pallas import tpu as pltpu


def _round_up(x, m):
    return -(-x // m) * m


def _tpu_params():
    """Generation-aware MXU width + VMEM budget (v5e / v6e / v7x tuning)."""
    kind = ""
    try:
        kind = jax.devices()[0].device_kind.lower()
    except Exception:
        pass
    if "v7" in kind:        # 256-wide MXU, only 64 MiB VMEM per TensorCore
        return {"mxu": 256, "vmem_limit": 44 * 1024 * 1024}
    if "v6" in kind:        # 2x256x256 MXU, 128 MiB VMEM
        return {"mxu": 256, "vmem_limit": 96 * 1024 * 1024}
    if "v5" in kind and ("lite" in kind or "v5e" in kind):   # v5e: 4x128x128 MXU, 128 MiB VMEM
        return {"mxu": 128, "vmem_limit": 96 * 1024 * 1024}
    return {"mxu": 128, "vmem_limit": 48 * 1024 * 1024}       # unknown / older: conservative


def _vmem_tile_bytes(shape, dtype):
    """VMEM footprint of one tile, accounting for lane (128) / sublane padding."""
    itemsize = jnp.dtype(dtype).itemsize
    sub = 8 * max(1, 4 // itemsize)
    dims = list(shape)
    if len(dims) >= 1:
        dims[-1] = _round_up(dims[-1], 128)
    if len(dims) >= 2:
        dims[-2] = _round_up(dims[-2], sub)
    n = 1
    for d in dims:
        n *= d
    return n * itemsize


# -----------------------------------------------------------------------------
# Pallas kernel: fused KxK conv (arbitrary stride via phase layout) + bias + ReLU
# -----------------------------------------------------------------------------
def _conv_bias_relu_kernel(x_ref, w_ref, b_ref, o_ref, *, KW, stride, TH, R, Hph, G, FK):
    # x_ref: (1, s*s*Hph, Wph, Cin)  phase-decomposed padded input (VMEM-resident per batch elem)
    # w_ref: (G, FK*Cin, TC)         fused weights, tap groups pre-flattened along the MXU K dim
    # b_ref: (1, TC)                 fused bias (float32)
    # o_ref: (1, R*TH, Wo, TC)       output rows / Cout tile (lane-dense, TC % 128 == 0)
    h = pl.program_id(2)
    Wo, TC = o_ref.shape[2], o_ref.shape[3]
    FKCin = w_ref.shape[1]
    bias = b_ref[0][None, :]

    for r in range(R):                          # row sub-tiles per grid step (amortize overhead)
        row0 = (h * R + r) * TH
        if TH % 8 == 0:
            row0 = pl.multiple_of(row0, 8)
        acc = jnp.zeros((TH * Wo, TC), jnp.float32)
        # Each group is one (TH*Wo, FK*Cin) x (FK*Cin, TC) MXU matmul with f32 accumulation.
        for g in range(G):
            parts = []
            for f in range(FK):
                t = g * FK + f
                kh, kw = t // KW, t % KW
                ph = (kh % stride) * stride + (kw % stride)   # space-to-depth phase index
                dh, dw = kh // stride, kw // stride           # unit-stride offsets inside phase
                parts.append(x_ref[0, pl.ds(row0 + ph * Hph + dh, TH), dw:dw + Wo, :])
            lhs = parts[0] if FK == 1 else jnp.concatenate(parts, axis=-1)
            acc = acc + jnp.dot(lhs.reshape(TH * Wo, FKCin), w_ref[g],
                                preferred_element_type=jnp.float32)
        acc = jnp.maximum(acc + bias, 0.0)      # bias + ReLU on the f32 accumulator
        o_ref[0, r * TH:(r + 1) * TH] = acc.reshape(TH, Wo, TC).astype(o_ref.dtype)


# -----------------------------------------------------------------------------
# NHWC entry point (preferred: keeps activations NHWC end-to-end, no layout transposes)
# -----------------------------------------------------------------------------
def repvgg_block_pallas_nhwc(x_nhwc, w_fused_hwio, b_fused, *, stride=1, padding=1,
                             compute_dtype=jnp.bfloat16, fold_taps=None):
    """x: (N,H,W,Cin), w: (KH,KW,Cin,Cout), b: (Cout,) -> (N,Ho,Wo,Cout) in x.dtype."""
    N, H, W, Cin = x_nhwc.shape
    KH, KW, _, Cout = w_fused_hwio.shape
    out_dtype = x_nhwc.dtype
    s = int(stride)
    hw = _tpu_params()

    Ho = (H + 2 * padding - KH) // s + 1
    Wo = (W + 2 * padding - KW) // s + 1

    # ---- lane/sublane-friendly problem padding --------------------------------------
    Cout_p = _round_up(Cout, 128)                         # lane-dense stores / full MXU N
    TC = 256 if (hw["mxu"] >= 256 and Cout_p % 256 == 0) else 128
    wo_sub = 8 * max(1, 4 // jnp.dtype(compute_dtype).itemsize)   # 8 for f32, 16 for bf16
    Wo_p = _round_up(Wo, wo_sub)                          # layout-preserving reshapes in-kernel

    # Row tile: keep the f32 accumulator (TH*Wo_p, TC) within ~32 vregs.
    cap_th = max(1, 32768 // (Wo_p * TC))
    if Ho <= cap_th:
        TH, Ho_p = Ho, Ho
    else:
        TH = (cap_th // 8) * 8 if cap_th >= 8 else cap_th
        Ho_p = _round_up(Ho, TH)
    n_sub = Ho_p // TH
    if n_sub <= 8:
        R = n_sub
    else:
        R = 1
        for cand in (8, 4, 2):
            if n_sub % cand == 0:
                R = cand
                break
    n_h = n_sub // R

    # ---- glue: cast, zero pad, space-to-depth phase split (only when stride > 1) -----
    Hp2 = _round_up(max((Ho_p - 1) * s + KH, H + padding), s)
    Wp2 = _round_up(max((Wo_p - 1) * s + KW, W + padding), s)
    x = jnp.pad(x_nhwc.astype(compute_dtype),
                ((0, 0), (padding, Hp2 - H - padding), (padding, Wp2 - W - padding), (0, 0)))
    Hph, Wph = Hp2 // s, Wp2 // s
    if s > 1:
        # x_ph[n, (r*s + c)*Hph + i, j, :] == x_padded[n, i*s + r, j*s + c, :]
        # TODO(synk): in a full network, hoist this per stage (only the first block strides).
        x = x.reshape(N, Hph, s, Wph, s, Cin)
        x = jnp.transpose(x, (0, 2, 4, 1, 3, 5)).reshape(N, s * s * Hph, Wph, Cin)

    # ---- tap folding: feed the MXU contraction with K = FK*Cin -----------------------
    if fold_taps is None:
        if KH * KW * Cin <= hw["mxu"]:
            fold_taps = "all"      # very thin layers (stem): one matmul per sub-tile
        elif Cin < hw["mxu"]:
            fold_taps = "kw"       # fold the KW taps: 3 matmuls instead of 9
        else:
            fold_taps = "none"     # Cin already fills the MXU K dim
    G, FK = {"all": (1, KH * KW), "kw": (KH, KW), "none": (KH * KW, 1)}[fold_taps]

    w = jnp.pad(w_fused_hwio.astype(compute_dtype),
                ((0, 0), (0, 0), (0, 0), (0, Cout_p - Cout)))
    w = w.reshape(G, FK * Cin, Cout_p)
    b2d = jnp.pad(b_fused.astype(jnp.float32), ((0, Cout_p - Cout),)).reshape(1, Cout_p)

    n_c = Cout_p // TC

    # ---- VMEM budgeting: single-buffer the resident image if double-buffering is tight
    img_bytes = _vmem_tile_bytes((s * s * Hph, Wph, Cin), compute_dtype)
    img_spec_kwargs = {}
    if 2 * img_bytes > hw["vmem_limit"] // 2:
        img_spec_kwargs["pipeline_mode"] = pl.Buffered(1)   # image only changes with n

    kernel = functools.partial(_conv_bias_relu_kernel, KW=KW, stride=s,
                               TH=TH, R=R, Hph=Hph, G=G, FK=FK)

    out = pl.pallas_call(
        kernel,
        out_shape=jax.ShapeDtypeStruct((N, Ho_p, Wo_p, Cout_p), out_dtype),
        grid_spec=pltpu.PrefetchScalarGridSpec(
            num_scalar_prefetch=0,
            # N outermost: on v7x the cross-TensorCore split hits N/Cout (not h), so each
            # core DMAs the resident image once per batch element it owns.
            grid=(N, n_c, n_h),
            in_specs=[
                # Full phase-decomposed padded image per batch element; block index constant
                # across (c, h), so it is only DMA'd when the batch index changes.
                pl.BlockSpec((1, s * s * Hph, Wph, Cin), lambda n, c, h: (n, 0, 0, 0),
                             **img_spec_kwargs),
                pl.BlockSpec((G, FK * Cin, TC), lambda n, c, h: (0, 0, c)),
                pl.BlockSpec((1, TC), lambda n, c, h: (0, c)),
            ],
            out_specs=pl.BlockSpec((1, R * TH, Wo_p, TC), lambda n, c, h: (n, h, 0, c)),
        ),
        compiler_params=pltpu.CompilerParams(
            dimension_semantics=("parallel", "parallel", "parallel"),
            vmem_limit_bytes=hw["vmem_limit"],
        ),
    )(x, w, b2d)

    return out[:, :Ho, :Wo, :Cout]


def repvgg_block_pallas(x_nchw, w_fused_hwio, b_fused, *, stride=1, padding=1,
                        compute_dtype=jnp.bfloat16, fold_taps=None):
    """PyTorch-layout (NCHW) convenience wrapper.

    NOTE: in a full network keep activations NHWC end-to-end and call
    repvgg_block_pallas_nhwc directly -- these two transposes cost two extra full HBM
    round trips per block.
    """
    x = jnp.transpose(x_nchw, (0, 2, 3, 1))
    y = repvgg_block_pallas_nhwc(x, w_fused_hwio, b_fused, stride=stride, padding=padding,
                                 compute_dtype=compute_dtype, fold_taps=fold_taps)
    return jnp.transpose(y, (0, 3, 1, 2))


# -----------------------------------------------------------------------------
# Parameter construction: RepVGG multi-branch weights, BN-fused and branch-summed
# (exact reparameterization of the training-time branch sum, eval-mode BN).
# -----------------------------------------------------------------------------
def _fuse_bn(w_oihw, gamma, beta, mean, var, eps=1e-5):
    sc = gamma / jnp.sqrt(var + eps)
    return w_oihw * sc[:, None, None, None], beta - mean * sc


def make_repvgg_params(key, in_ch, out_ch, k=3, stride=1):
    ks = jax.random.split(key, 14)
    f32 = jnp.float32
    c = k // 2

    # 3x3 branch (conv + BN)
    w3 = 0.1 * jax.random.normal(ks[0], (out_ch, in_ch, k, k), f32)
    w3f, b3f = _fuse_bn(w3, 1.0 + 0.1 * jax.random.normal(ks[1], (out_ch,), f32),
                        0.1 * jax.random.normal(ks[2], (out_ch,), f32),
                        0.1 * jax.random.normal(ks[3], (out_ch,), f32),
                        jnp.abs(1.0 + 0.1 * jax.random.normal(ks[4], (out_ch,), f32)))

    # 1x1 branch (conv + BN), padded to kxk at the center
    w1 = 0.1 * jax.random.normal(ks[5], (out_ch, in_ch, 1, 1), f32)
    w1f, b1f = _fuse_bn(w1, 1.0 + 0.1 * jax.random.normal(ks[6], (out_ch,), f32),
                        0.1 * jax.random.normal(ks[7], (out_ch,), f32),
                        0.1 * jax.random.normal(ks[8], (out_ch,), f32),
                        jnp.abs(1.0 + 0.1 * jax.random.normal(ks[9], (out_ch,), f32)))
    w1f = jnp.pad(w1f, ((0, 0), (0, 0), (c, c), (c, c)))

    # Identity branch (BatchNorm2d only) -> identity kernel at the center, BN-fused
    if in_ch == out_ch and stride == 1:
        wid = jnp.zeros((out_ch, in_ch, k, k), f32)
        wid = wid.at[:, :, c, c].set(jnp.eye(out_ch, in_ch, dtype=f32))
        widf, bidf = _fuse_bn(wid, 1.0 + 0.1 * jax.random.normal(ks[10], (out_ch,), f32),
                              0.1 * jax.random.normal(ks[11], (out_ch,), f32),
                              0.1 * jax.random.normal(ks[12], (out_ch,), f32),
                              jnp.abs(1.0 + 0.1 * jax.random.normal(ks[13], (out_ch,), f32)))
    else:
        widf = jnp.zeros((out_ch, in_ch, k, k), f32)
        bidf = jnp.zeros((out_ch,), f32)

    w_fused_oihw = w3f + w1f + widf          # (Cout, Cin, KH, KW)
    b_fused = b3f + b1f + bidf               # (Cout,)
    w_fused_hwio = jnp.transpose(w_fused_oihw, (2, 3, 1, 0))   # (KH, KW, Cin, Cout)
    return w_fused_hwio, b_fused, w_fused_oihw


# -----------------------------------------------------------------------------
def _reference_nchw(x_nchw, w_oihw, b, stride, padding, compute_dtype=jnp.bfloat16):
    y = jax.lax.conv_general_dilated(
        x_nchw.astype(compute_dtype), w_oihw.astype(compute_dtype),
        window_strides=(stride, stride),
        padding=[(padding, padding), (padding, padding)],
        dimension_numbers=("NCHW", "OIHW", "NCHW"),
        preferred_element_type=jnp.float32)
    return jnp.maximum(y + b[None, :, None, None], 0.0).astype(x_nchw.dtype)


def _reference_nhwc(x_nhwc, w_hwio, b, stride, padding, compute_dtype=jnp.bfloat16):
    y = jax.lax.conv_general_dilated(
        x_nhwc.astype(compute_dtype), w_hwio.astype(compute_dtype),
        window_strides=(stride, stride),
        padding=[(padding, padding), (padding, padding)],
        dimension_numbers=("NHWC", "HWIO", "NHWC"),
        preferred_element_type=jnp.float32)
    return jnp.maximum(y + b[None, None, None, :], 0.0).astype(x_nhwc.dtype)


if __name__ == "__main__":
    key = jax.random.PRNGKey(0)
    k1, k2, k3, k4, k5, k6 = jax.random.split(key, 6)

    # Config 1: stride-1 block, identity branch active, NCHW (PyTorch-layout) wrapper,
    # thin Cin -> all KH*KW taps folded into one MXU matmul per row tile.
    N, C, H, W = 2, 4, 16, 16
    x1 = jax.random.normal(k1, (N, C, H, W), jnp.float32)
    w1, b1, w1_oihw = make_repvgg_params(k2, C, C, k=3, stride=1)
    out1 = jax.block_until_ready(repvgg_block_pallas(x1, w1, b1, stride=1, padding=1))
    ref1 = _reference_nchw(x1, w1_oihw, b1, 1, 1)
    assert out1.shape == (N, C, H, W)
    assert jnp.allclose(out1, ref1, rtol=2e-2, atol=2e-2), "mismatch vs reference (stride 1)"

    # Config 2: stride-2 downsampling block, NHWC end-to-end, Cout on the lane axis.
    CI2, CO2 = 8, 256
    x2 = jax.random.normal(k3, (N, H, W, CI2), jnp.float32)
    w2, b2, _ = make_repvgg_params(k4, CI2, CO2, k=3, stride=2)
    out2 = jax.block_until_ready(repvgg_block_pallas_nhwc(x2, w2, b2, stride=2, padding=1))
    ref2 = _reference_nhwc(x2, w2, b2, 2, 1)
    assert out2.shape == (N, 8, 8, CO2)
    assert jnp.allclose(out2, ref2, rtol=2e-2, atol=2e-2), "mismatch vs reference (stride 2)"

    # Config 3: non-aligned Ho/Wo/Cout (exercises pad+crop paths) with a forced per-kh KW fold.
    CI3, CO3 = 32, 64
    x3 = jax.random.normal(k5, (1, 14, 14, CI3), jnp.float32)
    w3, b3, _ = make_repvgg_params(k6, CI3, CO3, k=3, stride=1)
    out3 = jax.block_until_ready(
        repvgg_block_pallas_nhwc(x3, w3, b3, stride=1, padding=1, fold_taps="kw"))
    ref3 = _reference_nhwc(x3, w3, b3, 1, 1)
    assert out3.shape == (1, 14, 14, CO3)
    assert jnp.allclose(out3, ref3, rtol=2e-2, atol=2e-2), "mismatch vs reference (kw fold)"

    print("KERNEL_OK")
</pallas_src>

<mosaic_0001>
module attributes {stable_mosaic.version = 11 : i64} {
  func.func @_conv_bias_relu_kernel(%arg0: i32, %arg1: i32, %arg2: i32, %arg3: memref<1x18x18x4xbf16, #tpu.memory_space<vmem>>, %arg4: memref<1x36x128xbf16, #tpu.memory_space<vmem>>, %arg5: memref<1x128xf32, #tpu.memory_space<vmem>>, %arg6: memref<1x16x16x128xf32, #tpu.memory_space<vmem>>) attributes {dimension_semantics = [#tpu.dimension_semantics<parallel>, #tpu.dimension_semantics<parallel>, #tpu.dimension_semantics<parallel>], iteration_bounds = array<i64: 2, 1, 1>, scalar_prefetch = 0 : i64, scratch_operands = 0 : i64, tpu.core_type = #tpu.core_type<tc>, window_params = [{transform_indices = @transform_0, window_bounds = array<i64: 1, 18, 18, 4>}, {transform_indices = @transform_1, window_bounds = array<i64: 1, 36, 128>}, {transform_indices = @transform_2, window_bounds = array<i64: 1, 128>}, {transform_indices = @transform_3, window_bounds = array<i64: 1, 16, 16, 128>}]} {
    %c0 = arith.constant 0 : index
    %c0_0 = arith.constant 0 : index
    %0 = vector.load %arg5[%c0, %c0_0] : memref<1x128xf32, #tpu.memory_space<vmem>>, vector<1x128xf32>
    %1 = vector.shape_cast %0 : vector<1x128xf32> to vector<128xf32>
    %2 = vector.shape_cast %1 : vector<128xf32> to vector<1x128xf32>
    %c1_i32 = arith.constant 1 : i32
    %3 = arith.muli %arg2, %c1_i32 : i32
    %c0_i32 = arith.constant 0 : i32
    %4 = arith.addi %3, %c0_i32 : i32
    %c16_i32 = arith.constant 16 : i32
    %5 = arith.muli %4, %c16_i32 : i32
    %6 = tpu.assume_multiple %5, 8 : i32
    %cst = arith.constant 0.000000e+00 : f32
    %7 = vector.broadcast %cst : f32 to vector<256x128xf32>
    %c0_i32_1 = arith.constant 0 : i32
    %8 = arith.addi %6, %c0_i32_1 : i32
    %c0_i32_2 = arith.constant 0 : i32
    %9 = arith.addi %8, %c0_i32_2 : i32
    %c0_3 = arith.constant 0 : index
    %10 = arith.index_cast %9 : i32 to index
    %c0_4 = arith.constant 0 : index
    %c0_5 = arith.constant 0 : index
    %11 = vector.load %arg3[%c0_3, %10, %c0_4, %c0_5] : memref<1x18x18x4xbf16, #tpu.memory_space<vmem>>, vector<1x16x16x4xbf16>
    %12 = vector.shape_cast %11 : vector<1x16x16x4xbf16> to vector<16x16x4xbf16>
    %c0_i32_6 = arith.constant 0 : i32
    %13 = arith.addi %6, %c0_i32_6 : i32
    %c0_i32_7 = arith.constant 0 : i32
    %14 = arith.addi %13, %c0_i32_7 : i32
    %c0_8 = arith.constant 0 : index
    %15 = arith.index_cast %14 : i32 to index
    %c1 = arith.constant 1 : index
    %c0_9 = arith.constant 0 : index
    %16 = vector.load %arg3[%c0_8, %15, %c1, %c0_9] : memref<1x18x18x4xbf16, #tpu.memory_space<vmem>>, vector<1x16x16x4xbf16>
    %17 = vector.shape_cast %16 : vector<1x16x16x4xbf16> to vector<16x16x4xbf16>
    %c0_i32_10 = arith.constant 0 : i32
    %18 = arith.addi %6, %c0_i32_10 : i32
    %c0_i32_11 = arith.constant 0 : i32
    %19 = arith.addi %18, %c0_i32_11 : i32
    %c0_12 = arith.constant 0 : index
    %20 = arith.index_cast %19 : i32 to index
    %c2 = arith.constant 2 : index
    %c0_13 = arith.constant 0 : index
    %21 = vector.load %arg3[%c0_12, %20, %c2, %c0_13] : memref<1x18x18x4xbf16, #tpu.memory_space<vmem>>, vector<1x16x16x4xbf16>
    %22 = vector.shape_cast %21 : vector<1x16x16x4xbf16> to vector<16x16x4xbf16>
    %c0_i32_14 = arith.constant 0 : i32
    %23 = arith.addi %6, %c0_i32_14 : i32
    %c1_i32_15 = arith.constant 1 : i32
    %24 = arith.addi %23, %c1_i32_15 : i32
    %c0_16 = arith.constant 0 : index
    %25 = arith.index_cast %24 : i32 to index
    %c0_17 = arith.constant 0 : index
    %c0_18 = arith.constant 0 : index
    %26 = vector.load %arg3[%c0_16, %25, %c0_17, %c0_18] : memref<1x18x18x4xbf16, #tpu.memory_space<vmem>>, vector<1x16x16x4xbf16>
    %27 = vector.shape_cast %26 : vector<1x16x16x4xbf16> to vector<16x16x4xbf16>
    %c0_i32_19 = arith.constant 0 : i32
    %28 = arith.addi %6, %c0_i32_19 : i32
    %c1_i32_20 = arith.constant 1 : i32
    %29 = arith.addi %28, %c1_i32_20 : i32
    %c0_21 = arith.constant 0 : index
    %30 = arith.index_cast %29 : i32 to index
    %c1_22 = arith.constant 1 : index
    %c0_23 = arith.constant 0 : index
    %31 = vector.load %arg3[%c0_21, %30, %c1_22, %c0_23] : memref<1x18x18x4xbf16, #tpu.memory_space<vmem>>, vector<1x16x16x4xbf16>
    %32 = vector.shape_cast %31 : vector<1x16x16x4xbf16> to vector<16x16x4xbf16>
    %c0_i32_24 = arith.constant 0 : i32
    %33 = arith.addi %6, %c0_i32_24 : i32
    %c1_i32_25 = arith.constant 1 : i32
    %34 = arith.addi %33, %c1_i32_25 : i32
    %c0_26 = arith.constant 0 : index
    %35 = arith.index_cast %34 : i32 to index
    %c2_27 = arith.constant 2 : index
    %c0_28 = arith.constant 0 : index
    %36 = vector.load %arg3[%c0_26, %35, %c2_27, %c0_28] : memref<1x18x18x4xbf16, #tpu.memory_space<vmem>>, vector<1x16x16x4xbf16>
    %37 = vector.shape_cast %36 : vector<1x16x16x4xbf16> to vector<16x16x4xbf16>
    %c0_i32_29 = arith.constant 0 : i32
    %38 = arith.addi %6, %c0_i32_29 : i32
    %c2_i32 = arith.constant 2 : i32
    %39 = arith.addi %38, %c2_i32 : i32
    %c0_30 = arith.constant 0 : index
    %40 = arith.index_cast %39 : i32 to index
    %c0_31 = arith.constant 0 : index
    %c0_32 = arith.constant 0 : index
    %41 = vector.load %arg3[%c0_30, %40, %c0_31, %c0_32] : memref<1x18x18x4xbf16, #tpu.memory_space<vmem>>, vector<1x16x16x4xbf16>
    %42 = vector.shape_cast %41 : vector<1x16x16x4xbf16> to vector<16x16x4xbf16>
    %c0_i32_33 = arith.constant 0 : i32
    %43 = arith.addi %6, %c0_i32_33 : i32
    %c2_i32_34 = arith.constant 2 : i32
    %44 = arith.addi %43, %c2_i32_34 : i32
    %c0_35 = arith.constant 0 : index
    %45 = arith.index_cast %44 : i32 to index
    %c1_36 = arith.constant 1 : index
    %c0_37 = arith.constant 0 : index
    %46 = vector.load %arg3[%c0_35, %45, %c1_36, %c0_37] : memref<1x18x18x4xbf16, #tpu.memory_space<vmem>>, vector<1x16x16x4xbf16>
    %47 = vector.shape_cast %46 : vector<1x16x16x4xbf16> to vector<16x16x4xbf16>
    %c0_i32_38 = arith.constant 0 : i32
    %48 = arith.addi %6, %c0_i32_38 : i32
    %c2_i32_39 = arith.constant 2 : i32
    %49 = arith.addi %48, %c2_i32_39 : i32
    %c0_40 = arith.constant 0 : index
    %50 = arith.index_cast %49 : i32 to index
    %c2_41 = arith.constant 2 : index
    %c0_42 = arith.constant 0 : index
    %51 = vector.load %arg3[%c0_40, %50, %c2_41, %c0_42] : memref<1x18x18x4xbf16, #tpu.memory_space<vmem>>, vector<1x16x16x4xbf16>
    %52 = vector.shape_cast %51 : vector<1x16x16x4xbf16> to vector<16x16x4xbf16>
    %53 = tpu.concatenate %12, %17, %22, %27, %32, %37, %42, %47, %52 in 2 : vector<16x16x4xbf16>, vector<16x16x4xbf16>, vector<16x16x4xbf16>, vector<16x16x4xbf16>, vector<16x16x4xbf16>, vector<16x16x4xbf16>, vector<16x16x4xbf16>, vector<16x16x4xbf16>, vector<16x16x4xbf16> -> vector<16x16x36xbf16>
    %54 = vector.shape_cast %53 : vector<16x16x36xbf16> to vector<256x36xbf16>
    %c0_43 = arith.constant 0 : index
    %c0_44 = arith.constant 0 : index
    %c0_45 = arith.constant 0 : index
    %55 = vector.load %arg4[%c0_43, %c0_44, %c0_45] : memref<1x36x128xbf16, #tpu.memory_space<vmem>>, vector<1x36x128xbf16>
    %56 = vector.shape_cast %55 : vector<1x36x128xbf16> to vector<36x128xbf16>
    %cst_46 = arith.constant dense<0.000000e+00> : vector<256x128xf32>
    %57 = tpu.matmul %54, %56, %cst_46 {dimension_numbers = #tpu.dot_dimension_numbers<[1], [0], [0], [1], [0, 0, 1, 1], [], []>} : vector<256x36xbf16>, vector<36x128xbf16>, vector<256x128xf32> -> vector<256x128xf32>
    %58 = arith.addf %7, %57 : vector<256x128xf32>
    %59 = vector.broadcast %2 : vector<1x128xf32> to vector<256x128xf32>
    %60 = arith.addf %58, %59 : vector<256x128xf32>
    %cst_47 = arith.constant 0.000000e+00 : f32
    %61 = vector.broadcast %cst_47 : f32 to vector<256x128xf32>
    %62 = arith.maximumf %60, %61 : vector<256x128xf32>
    %63 = vector.shape_cast %62 : vector<256x128xf32> to vector<16x16x128xf32>
    %c0_48 = arith.constant 0 : index
    %c0_49 = arith.constant 0 : index
    %c0_50 = arith.constant 0 : index
    %c0_51 = arith.constant 0 : index
    %64 = vector.load %arg6[%c0_48, %c0_49, %c0_50, %c0_51] : memref<1x16x16x128xf32, #tpu.memory_space<vmem>>, vector<1x16x16x128xf32>
    %65 = vector.shape_cast %64 : vector<1x16x16x128xf32> to vector<16x16x128xf32>
    %66 = vector.shape_cast %63 : vector<16x16x128xf32> to vector<1x16x16x128xf32>
    tpu.vector_store %arg6[%c0_48, %c0_49, %c0_50, %c0_51], %66 {strides = array<i32>} : memref<1x16x16x128xf32, #tpu.memory_space<vmem>>, vector<1x16x16x128xf32>,
    return
  }
  func.func @transform_0(%arg0: i32, %arg1: i32, %arg2: i32) -> (i32, i32, i32, i32) {
    %c0_i32 = arith.constant 0 : i32
    %c0_i32_0 = arith.constant 0 : i32
    %c0_i32_1 = arith.constant 0 : i32
    %c0_i32_2 = arith.constant 0 : i32
    return %arg0, %c0_i32, %c0_i32_0, %c0_i32_1 : i32, i32, i32, i32
  }
  func.func @transform_1(%arg0: i32, %arg1: i32, %arg2: i32) -> (i32, i32, i32) {
    %c0_i32 = arith.constant 0 : i32
    %c0_i32_0 = arith.constant 0 : i32
    %c0_i32_1 = arith.constant 0 : i32
    return %c0_i32, %c0_i32_0, %arg1 : i32, i32, i32
  }
  func.func @transform_2(%arg0: i32, %arg1: i32, %arg2: i32) -> (i32, i32) {
    %c0_i32 = arith.constant 0 : i32
    %c0_i32_0 = arith.constant 0 : i32
    return %c0_i32, %arg1 : i32, i32
  }
  func.func @transform_3(%arg0: i32, %arg1: i32, %arg2: i32) -> (i32, i32, i32, i32) {
    %c0_i32 = arith.constant 0 : i32
    %c0_i32_0 = arith.constant 0 : i32
    return %arg0, %arg2, %c0_i32, %arg1 : i32, i32, i32, i32
  }
}

</mosaic_0001>

<llo_original>
// kernel: tpu_custom_call.1
$region0: #{tpu_custom_call.1}
  #allocation0 [shape = 'u32[]', space=smem, size = 0x4, offset = 0x4, fixed_abs, tag = 'smem constant byte address 0x4 - core index']
  #allocation1 [shape = 'u32[144,128]{1,0:T(1,128)}', space=vmem, size = 0x12000, scoped, tag = 'internal scratch']
  %s0 = inlined_call_operand.vmem [shape: bf16[2,18,18,4], index: 0, kind: input, shape index: {}]
  %s1 = inlined_call_operand.vmem [shape: bf16[1,36,128], index: 1, kind: input, shape index: {}]
  %s2 = inlined_call_operand.vmem [shape: f32[1,128], index: 2, kind: input, shape index: {}]
  %s3 = inlined_call_operand.hbm [shape: f32[2,16,16,128], index: 3, kind: output, shape index: {}]
  %s4 = sld [smem:[#allocation0]]
  $region45: #{tpu_custom_call.1} parent=0
    _
  %s6 = ssub.s32 1, %s4
  %s7 = scalar_select 0, %s6, %s4
  $region1: #{tpu_custom_call.1} parent=0
    #allocation2 [shape = 'u8[262144]{0}', space=vmem, size = 0x40000, scoped, tag = 'output window, operand 0']
    #allocation3 [shape = 's32[2]{0}', space=sflag, size = 0x8, scoped, tag = 'scoped memory for tpu_custom_call.1']
    %8 = vsyncpa [#allocation3], 0
    %s9 = scalar_lea.sflag [#allocation3], 1
    %10 = vsyncpa %s9, 0
    loop: start=0, step=1, limit=4
    $region2: #{tpu_custom_call.1} parent=1 // loop_pre_header
      _
    $region3: #{tpu_custom_call.1} parent=1 // loop_header
      %s12 = sphi 0, %s16
      %p13 = scmp.ge.s32.totalorder %s12, 4
      %s19 = sphi 0, %s38
      %s20 = sphi 0, %s34
      %s21 = sphi 0, %s30
      %s22 = sphi 0, %s19
      %s23 = sphi 0, %s20
      %s24 = sphi 0, %s21
      %s25 = sphi 0, %s22
      %s26 = sphi 0, %s23
      %s27 = sphi 0, %s24
      %s41 = sphi 0, %s43
      %s44 = sphi 0, %s41
      %s45 = sphi 0, %s44
      %s61 = sphi 0, %s45
      %s67 = sphi 0, %s69
      %s70 = sphi 0, %s67
      %s71 = sphi 0, %s70
      %s87 = sphi 0, %s71
      %s93 = sphi 0, %s95
      %s96 = sphi 0, %s93
      %s97 = sphi 0, %s96
      %s113 = sphi 0, %s97
      %s123 = sphi 0, %s125
      %s126 = sphi 0, %s123
      %s127 = sphi 0, %s126
      %s143 = sphi 0, %s127
    $region4: #{tpu_custom_call.1} parent=1 // loop_header_branch
      %15 = sbr.rel (%p13) target = $region8
    $region5: #{tpu_custom_call.1} parent=1 // loop_body
      %s17 = ssub.s32 %s12, 1
      %s18 = ssub.s32 %s12, 2
      %s28 = sadd.s32 1, %s21
      %p29 = scmp.ge.s32.totalorder %s28, 1
      %s30 = scalar_select %p29, 0, %s28
      %s31 = sadd.s32 1, %s20
      %s32 = scalar_select %p29, %s31, %s20
      %p33 = scmp.ge.s32.totalorder %s32, 1
      %s34 = scalar_select %p33, 0, %s32
      %s35 = sadd.s32 1, %s19
      %s36 = scalar_select %p33, %s35, %s19
      %p37 = scmp.ge.s32.totalorder %s36, 2
      %s38 = scalar_select %p37, 0, %s36
      %s39 = ssub.s32 %s19, %s38
      %p40 = scmp.eq.s32.totalorder %s39, 0
      %s42 = sadd.s32 %s41, 1
      %s43 = scalar_select %p40, %s41, %s42
      %p46 = pneg %p40
      %p47 = scmp.eq.s32.totalorder %s12, 1
      %p48 = por %p46, %p47
      %p49 = scmp.ne.s32.totalorder %s41, %s44
      %p50 = scmp.eq.s32.totalorder %s12, 0
      %p51 = por %p49, %p50
      %p52 = scmp.ne.s32.totalorder %s41, %s44
      %p53 = scmp.eq.s32.totalorder %s17, 1
      %p54 = por %p52, %p53
      %p55 = scmp.ne.s32.totalorder %s44, %s45
      %p56 = scmp.eq.s32.totalorder %s17, 0
      %p57 = por %p55, %p56
      %p58 = scmp.ne.s32.totalorder %s44, %s45
      %p59 = scmp.eq.s32.totalorder %s18, 1
      %p60 = por %p58, %p59
      %p62 = scmp.ne.s32.totalorder %s45, %s61
      %p63 = scmp.eq.s32.totalorder %s18, 0
      %p64 = por %p62, %p63
      %s65 = ssub.s32 %s20, %s34
      %p66 = scmp.eq.s32.totalorder %s65, 0
      %s68 = sadd.s32 %s67, 1
      %s69 = scalar_select %p66, %s67, %s68
      %p72 = pneg %p66
      %p73 = scmp.eq.s32.totalorder %s12, 1
      %p74 = por %p72, %p73
      %p75 = scmp.ne.s32.totalorder %s67, %s70
      %p76 = scmp.eq.s32.totalorder %s12, 0
      %p77 = por %p75, %p76
      %p78 = scmp.ne.s32.totalorder %s67, %s70
      %p79 = scmp.eq.s32.totalorder %s17, 1
      %p80 = por %p78, %p79
      %p81 = scmp.ne.s32.totalorder %s70, %s71
      %p82 = scmp.eq.s32.totalorder %s17, 0
      %p83 = por %p81, %p82
      %p84 = scmp.ne.s32.totalorder %s70, %s71
      %p85 = scmp.eq.s32.totalorder %s18, 1
      %p86 = por %p84, %p85
      %p88 = scmp.ne.s32.totalorder %s71, %s87
      %p89 = scmp.eq.s32.totalorder %s18, 0
      %p90 = por %p88, %p89
      %s91 = ssub.s32 %s20, %s34
      %p92 = scmp.eq.s32.totalorder %s91, 0
      %s94 = sadd.s32 %s93, 1
      %s95 = scalar_select %p92, %s93, %s94
      %p98 = pneg %p92
      %p99 = scmp.eq.s32.totalorder %s12, 1
      %p100 = por %p98, %p99
      %p101 = scmp.ne.s32.totalorder %s93, %s96
      %p102 = scmp.eq.s32.totalorder %s12, 0
      %p103 = por %p101, %p102
      %p104 = scmp.ne.s32.totalorder %s93, %s96
      %p105 = scmp.eq.s32.totalorder %s17, 1
      %p106 = por %p104, %p105
      %p107 = scmp.ne.s32.totalorder %s96, %s97
      %p108 = scmp.eq.s32.totalorder %s17, 0
      %p109 = por %p107, %p108
      %p110 = scmp.ne.s32.totalorder %s96, %s97
      %p111 = scmp.eq.s32.totalorder %s18, 1
      %p112 = por %p110, %p111
      %p114 = scmp.ne.s32.totalorder %s97, %s113
      %p115 = scmp.eq.s32.totalorder %s18, 0
      %p116 = por %p114, %p115
      %s117 = ssub.s32 %s19, %s38
      %s118 = ssub.s32 %s21, %s30
      %s119 = sor.u32 %s117, %s118
      %s120 = ssub.s32 %s20, %s34
      %s121 = sor.u32 %s119, %s120
      %p122 = scmp.eq.s32.totalorder %s121, 0
      %s124 = sadd.s32 %s123, 1
      %s125 = scalar_select %p122, %s123, %s124
      %p128 = pneg %p122
      %p129 = scmp.eq.s32.totalorder %s12, 1
      %p130 = por %p128, %p129
      %p131 = scmp.ne.s32.totalorder %s123, %s126
      %p132 = scmp.eq.s32.totalorder %s12, 0
      %p133 = por %p131, %p132
      %p134 = scmp.ne.s32.totalorder %s123, %s126
      %p135 = scmp.eq.s32.totalorder %s17, 1
      %p136 = por %p134, %p135
      %p137 = scmp.ne.s32.totalorder %s126, %s127
      %p138 = scmp.eq.s32.totalorder %s17, 0
      %p139 = por %p137, %p138
      %p140 = scmp.ne.s32.totalorder %s126, %s127
      %p141 = scmp.eq.s32.totalorder %s18, 1
      %p142 = por %p140, %p141
      %p144 = scmp.ne.s32.totalorder %s127, %s143
      %p145 = scmp.eq.s32.totalorder %s18, 0
      %p146 = por %p144, %p145
      %p147 = scmp.le.s32.totalorder 1, %s12
      %p148 = scmp.lt.s32.totalorder %s12, 3
      %p149 = pnand %p147, %p148
      %p150 = pneg %p149
      // Predicated region
      $region9: #{tpu_custom_call.1} parent=5 // pred_check
        _
      $region10: #{tpu_custom_call.1} parent=5 // pred_check_branch
        %152 = sbr.rel (%p149) target = $region12
      $region11: #{tpu_custom_call.1} parent=5 // pred_region
        %s153 = ssub.s32 %s12, 1
        // Predicated region
        $region13: #{tpu_custom_call.1} parent=11 // pred_check
          %p154 = pneg %p83
        $region14: #{tpu_custom_call.1} parent=11 // pred_check_branch
          %156 = sbr.rel (%p154) target = $region16
        $region15: #{tpu_custom_call.1} parent=11 // pred_region
          %p157 = scmp.lt.s32.totalorder %s23, 0
          %s158 = scalar_select %p157, %s23, 0
          %s159 = smul.addr %s158, 4
          %s160 = scalar_lea.vmem %s1, %s159
        $region16: #{tpu_custom_call.1} parent=11 // pred_fallthru
          _
        // Predicated region
        $region17: #{tpu_custom_call.1} parent=11 // pred_check
          %p161 = pneg %p109
        $region18: #{tpu_custom_call.1} parent=11 // pred_check_branch
          %163 = sbr.rel (%p161) target = $region20
        $region19: #{tpu_custom_call.1} parent=11 // pred_region
          %p164 = scmp.lt.s32.totalorder %s23, 0
          %s165 = scalar_select %p164, %s23, 0
          %s166 = scalar_lea.vmem %s2, %s165
        $region20: #{tpu_custom_call.1} parent=11 // pred_fallthru
          _
      $region12: #{tpu_custom_call.1} parent=5 // pred_fallthru
        _
      %p167 = scmp.lt.s32.totalorder %s12, 2
      // Predicated region
      $region21: #{tpu_custom_call.1} parent=5 // pred_check
        %p168 = pneg %p167
      $region22: #{tpu_custom_call.1} parent=5 // pred_check_branch
        %170 = sbr.rel (%p168) target = $region24
      $region23: #{tpu_custom_call.1} parent=5 // pred_region
        // Predicated region
        $region25: #{tpu_custom_call.1} parent=23 // pred_check
          %p171 = pneg %p51
        $region26: #{tpu_custom_call.1} parent=23 // pred_check_branch
          %173 = sbr.rel (%p171) target = $region28
        $region27: #{tpu_custom_call.1} parent=23 // pred_region
          %p174 = scmp.lt.s32.totalorder %s19, 1
          %s175 = scalar_select %p174, %s19, 1
          %s176 = smul.addr %s175, 54
          %s177 = smul.addr %s176, 4
          %s178 = scalar_lea.vmem %s0, %s177
        $region28: #{tpu_custom_call.1} parent=23 // pred_fallthru
          _
      $region24: #{tpu_custom_call.1} parent=5 // pred_fallthru
        _
      %p179 = scmp.le.s32.totalorder 1, %s12
      %p180 = scmp.lt.s32.totalorder %s12, 3
      %p181 = pnand %p179, %p180
      %p182 = pneg %p181
      // Predicated region
      $region29: #{tpu_custom_call.1} parent=5 // pred_check
        _
      $region30: #{tpu_custom_call.1} parent=5 // pred_check_branch
        %184 = sbr.rel (%p181) target = $region32
      $region31: #{tpu_custom_call.1} parent=5 // pred_region
        %s185 = ssub.s32 %s12, 1
        %p186 = scmp.lt.s32.totalorder %s22, 1
        %s187 = scalar_select %p186, %s22, 1
        %s188 = smul.addr %s187, 54
        %s189 = smul.addr %s188, 4
        %s190 = scalar_lea.vmem %s0, %s189
        %p191 = pneg %p57
        %p192 = pneg %p54
        %p193 = scmp.lt.s32.totalorder %s23, 0
        %s194 = scalar_select %p193, %s23, 0
        %s195 = smul.addr %s194, 4
        %s196 = scalar_lea.vmem %s1, %s195
        %p197 = pneg %p83
        %p198 = pneg %p80
        %p199 = scmp.lt.s32.totalorder %s23, 0
        %s200 = scalar_select %p199, %s23, 0
        %s201 = scalar_lea.vmem %s2, %s200
        %p202 = pneg %p109
        %p203 = pneg %p106
        %p204 = pneg %p139
        %p205 = pneg %p136
        %s206 = sand.u32 %s126, 1
        %s207 = scalar_lea.sflag [#allocation3], %s206
        %s208 = sand.u32 %s126, 1
        %s209 = smul.addr %s208, 256
        %s210 = scalar_lea.vmem [#allocation2], %s209
        %p211 = scmp.lt.s32.totalorder %s22, 1
        %s212 = scalar_select %p211, %s22, 1
        %s213 = smul.addr %s212, 54
        %s214 = smul.addr %s213, 4
        %s215 = scalar_lea.vmem %s0, %s214
        %p216 = scmp.lt.s32.totalorder %s23, 0
        %s217 = scalar_select %p216, %s23, 0
        %s218 = smul.addr %s217, 4
        %s219 = scalar_lea.vmem %s1, %s218
        %p220 = scmp.lt.s32.totalorder %s23, 0
        %s221 = scalar_select %p220, %s23, 0
        %s222 = scalar_lea.vmem %s2, %s221
        %s223 = smul.u32 16, %s24
        %v225 = vld [vmem:[%s222] sm:$0x1]
        %s226 = smul.u32 %s24, 16
        %s227 = smul.u32 %s226, 3
        %s228 = smul.addr %s227, 4
        %s229 = scalar_lea.vmem %s215, %s228
        %v230 = vld [vmem:[%s229] sm:$0xf]
        %v231 = vld [vmem:[%s229 + $0x4] sm:$0xf]
        %v232 = vld [vmem:[%s229 + $0xc] sm:$0xf]
        %v233 = vld [vmem:[%s229 + $0x10] sm:$0xf]
        %v234 = vld [vmem:[%s229 + $0x18] sm:$0xf]
        %v235 = vld [vmem:[%s229 + $0x1c] sm:$0xf]
        %v236 = vld [vmem:[%s229 + $0x24] sm:$0xf]
        %v237 = vld [vmem:[%s229 + $0x28] sm:$0xf]
        %v238 = vld [vmem:[%s229 + $0x30] sm:$0xf]
        %v239 = vld [vmem:[%s229 + $0x34] sm:$0xf]
        %v240 = vld [vmem:[%s229 + $0x3c] sm:$0xf]
        %v241 = vld [vmem:[%s229 + $0x40] sm:$0xf]
        %v242 = vld [vmem:[%s229 + $0x48] sm:$0xf]
        %v243 = vld [vmem:[%s229 + $0x4c] sm:$0xf]
        %v244 = vld [vmem:[%s229 + $0x54] sm:$0xf]
        %v245 = vld [vmem:[%s229 + $0x58] sm:$0xf]
        %v246 = vld [vmem:[%s229 + $0x60] sm:$0xf]
        %v247 = vld [vmem:[%s229 + $0x64] sm:$0xf]
        %v248 = vld [vmem:[%s229 + $0x6c] sm:$0xf]
        %v249 = vld [vmem:[%s229 + $0x70] sm:$0xf]
        %v250 = vld [vmem:[%s229 + $0x78] sm:$0xf]
        %v251 = vld [vmem:[%s229 + $0x7c] sm:$0xf]
        %v252 = vld [vmem:[%s229 + $0x84] sm:$0xf]
        %v253 = vld [vmem:[%s229 + $0x88] sm:$0xf]
        %v254 = vld [vmem:[%s229 + $0x90] sm:$0xf]
        %v255 = vld [vmem:[%s229 + $0x94] sm:$0xf]
        %v256 = vld [vmem:[%s229 + $0x9c] sm:$0xf]
        %v257 = vld [vmem:[%s229 + $0xa0] sm:$0xf]
        %v258 = vld [vmem:[%s229 + $0xa8] sm:$0xf]
        %v259 = vld [vmem:[%s229 + $0xac] sm:$0xf]
        %v260 = vld [vmem:[%s229 + $0xb4] sm:$0xf]
        %v261 = vld [vmem:[%s229 + $0xb8] sm:$0xf]
        %v262 = vld [vmem:[%s229 + $0x8] sm:$0x1]
        %v263 = vld [vmem:[%s229 + $0x14] sm:$0x1]
        %v264 = vld [vmem:[%s229 + $0x20] sm:$0x1]
        %v265 = vld [vmem:[%s229 + $0x2c] sm:$0x1]
        %v266 = vld [vmem:[%s229 + $0x38] sm:$0x1]
        %v267 = vld [vmem:[%s229 + $0x44] sm:$0x1]
        %v268 = vld [vmem:[%s229 + $0x50] sm:$0x1]
        %v269 = vld [vmem:[%s229 + $0x5c] sm:$0x1]
        %v270 = vld [vmem:[%s229 + $0x68] sm:$0x1]
        %v271 = vld [vmem:[%s229 + $0x74] sm:$0x1]
        %v272 = vld [vmem:[%s229 + $0x80] sm:$0x1]
        %v273 = vld [vmem:[%s229 + $0x8c] sm:$0x1]
        %v274 = vld [vmem:[%s229 + $0x98] sm:$0x1]
        %v275 = vld [vmem:[%s229 + $0xa4] sm:$0x1]
        %v276 = vld [vmem:[%s229 + $0xb0] sm:$0x1]
        %v277 = vld [vmem:[%s229 + $0xbc] sm:$0x1]
        %v278 = vld [vmem:[%s229] sm:$0xe]
        %v279 = vld [vmem:[%s229 + $0xc] sm:$0xe]
        %v280 = vld [vmem:[%s229 + $0x18] sm:$0xe]
        %v281 = vld [vmem:[%s229 + $0x24] sm:$0xe]
        %v282 = vld [vmem:[%s229 + $0x30] sm:$0xe]
        %v283 = vld [vmem:[%s229 + $0x3c] sm:$0xe]
        %v284 = vld [vmem:[%s229 + $0x48] sm:$0xe]
        %v285 = vld [vmem:[%s229 + $0x54] sm:$0xe]
        %v286 = vld [vmem:[%s229 + $0x60] sm:$0xe]
        %v287 = vld [vmem:[%s229 + $0x6c] sm:$0xe]
        %v288 = vld [vmem:[%s229 + $0x78] sm:$0xe]
        %v289 = vld [vmem:[%s229 + $0x84] sm:$0xe]
        %v290 = vld [vmem:[%s229 + $0x90] sm:$0xe]
        %v291 = vld [vmem:[%s229 + $0x9c] sm:$0xe]
        %v292 = vld [vmem:[%s229 + $0xa8] sm:$0xe]
        %v293 = vld [vmem:[%s229 + $0xb4] sm:$0xe]
        %s294 = sadd.s32 %s226, 1
        %s295 = smul.u32 %s294, 3
        %s296 = smul.addr %s295, 4
        %s297 = scalar_lea.vmem %s215, %s296
        %v298 = vld [vmem:[%s297] sm:$0xf]
        %v299 = vld [vmem:[%s297 + $0x4] sm:$0xf]
        %v300 = vld [vmem:[%s297 + $0xc] sm:$0xf]
        %v301 = vld [vmem:[%s297 + $0x10] sm:$0xf]
        %v302 = vld [vmem:[%s297 + $0x18] sm:$0xf]
        %v303 = vld [vmem:[%s297 + $0x1c] sm:$0xf]
        %v304 = vld [vmem:[%s297 + $0x24] sm:$0xf]
        %v305 = vld [vmem:[%s297 + $0x28] sm:$0xf]
        %v306 = vld [vmem:[%s297 + $0x30] sm:$0xf]
        %v307 = vld [vmem:[%s297 + $0x34] sm:$0xf]
        %v308 = vld [vmem:[%s297 + $0x3c] sm:$0xf]
        %v309 = vld [vmem:[%s297 + $0x40] sm:$0xf]
        %v310 = vld [vmem:[%s297 + $0x48] sm:$0xf]
        %v311 = vld [vmem:[%s297 + $0x4c] sm:$0xf]
        %v312 = vld [vmem:[%s297 + $0x54] sm:$0xf]
        %v313 = vld [vmem:[%s297 + $0x58] sm:$0xf]
        %v314 = vld [vmem:[%s297 + $0x60] sm:$0xf]
        %v315 = vld [vmem:[%s297 + $0x64] sm:$0xf]
        %v316 = vld [vmem:[%s297 + $0x6c] sm:$0xf]
        %v317 = vld [vmem:[%s297 + $0x70] sm:$0xf]
        %v318 = vld [vmem:[%s297 + $0x78] sm:$0xf]
        %v319 = vld [vmem:[%s297 + $0x7c] sm:$0xf]
        %v320 = vld [vmem:[%s297 + $0x84] sm:$0xf]
        %v321 = vld [vmem:[%s297 + $0x88] sm:$0xf]
        %v322 = vld [vmem:[%s297 + $0x90] sm:$0xf]
        %v323 = vld [vmem:[%s297 + $0x94] sm:$0xf]
        %v324 = vld [vmem:[%s297 + $0x9c] sm:$0xf]
        %v325 = vld [vmem:[%s297 + $0xa0] sm:$0xf]
        %v326 = vld [vmem:[%s297 + $0xa8] sm:$0xf]
        %v327 = vld [vmem:[%s297 + $0xac] sm:$0xf]
        %v328 = vld [vmem:[%s297 + $0xb4] sm:$0xf]
        %v329 = vld [vmem:[%s297 + $0xb8] sm:$0xf]
        %v330 = vld [vmem:[%s297 + $0x8] sm:$0x1]
        %v331 = vld [vmem:[%s297 + $0x14] sm:$0x1]
        %v332 = vld [vmem:[%s297 + $0x20] sm:$0x1]
        %v333 = vld [vmem:[%s297 + $0x2c] sm:$0x1]
        %v334 = vld [vmem:[%s297 + $0x38] sm:$0x1]
        %v335 = vld [vmem:[%s297 + $0x44] sm:$0x1]
        %v336 = vld [vmem:[%s297 + $0x50] sm:$0x1]
        %v337 = vld [vmem:[%s297 + $0x5c] sm:$0x1]
        %v338 = vld [vmem:[%s297 + $0x68] sm:$0x1]
        %v339 = vld [vmem:[%s297 + $0x74] sm:$0x1]
        %v340 = vld [vmem:[%s297 + $0x80] sm:$0x1]
        %v341 = vld [vmem:[%s297 + $0x8c] sm:$0x1]
        %v342 = vld [vmem:[%s297 + $0x98] sm:$0x1]
        %v343 = vld [vmem:[%s297 + $0xa4] sm:$0x1]
        %v344 = vld [vmem:[%s297 + $0xb0] sm:$0x1]
        %v345 = vld [vmem:[%s297 + $0xbc] sm:$0x1]
        %v346 = vld [vmem:[%s297] sm:$0xe]
        %v347 = vld [vmem:[%s297 + $0xc] sm:$0xe]
        %v348 = vld [vmem:[%s297 + $0x18] sm:$0xe]
        %v349 = vld [vmem:[%s297 + $0x24] sm:$0xe]
        %v350 = vld [vmem:[%s297 + $0x30] sm:$0xe]
        %v351 = vld [vmem:[%s297 + $0x3c] sm:$0xe]
        %v352 = vld [vmem:[%s297 + $0x48] sm:$0xe]
        %v353 = vld [vmem:[%s297 + $0x54] sm:$0xe]
        %v354 = vld [vmem:[%s297 + $0x60] sm:$0xe]
        %v355 = vld [vmem:[%s297 + $0x6c] sm:$0xe]
        %v356 = vld [vmem:[%s297 + $0x78] sm:$0xe]
        %v357 = vld [vmem:[%s297 + $0x84] sm:$0xe]
        %v358 = vld [vmem:[%s297 + $0x90] sm:$0xe]
        %v359 = vld [vmem:[%s297 + $0x9c] sm:$0xe]
        %v360 = vld [vmem:[%s297 + $0xa8] sm:$0xe]
        %v361 = vld [vmem:[%s297 + $0xb4] sm:$0xe]
        %s362 = sadd.s32 %s226, 2
        %s363 = smul.u32 %s362, 3
        %s364 = smul.addr %s363, 4
        %s365 = scalar_lea.vmem %s215, %s364
        %v366 = vld [vmem:[%s365] sm:$0xf]
        %v367 = vld [vmem:[%s365 + $0x4] sm:$0xf]
        %v368 = vld [vmem:[%s365 + $0xc] sm:$0xf]
        %v369 = vld [vmem:[%s365 + $0x10] sm:$0xf]
        %v370 = vld [vmem:[%s365 + $0x18] sm:$0xf]
        %v371 = vld [vmem:[%s365 + $0x1c] sm:$0xf]
        %v372 = vld [vmem:[%s365 + $0x24] sm:$0xf]
        %v373 = vld [vmem:[%s365 + $0x28] sm:$0xf]
        %v374 = vld [vmem:[%s365 + $0x30] sm:$0xf]
        %v375 = vld [vmem:[%s365 + $0x34] sm:$0xf]
        %v376 = vld [vmem:[%s365 + $0x3c] sm:$0xf]
        %v377 = vld [vmem:[%s365 + $0x40] sm:$0xf]
        %v378 = vld [vmem:[%s365 + $0x48] sm:$0xf]
        %v379 = vld [vmem:[%s365 + $0x4c] sm:$0xf]
        %v380 = vld [vmem:[%s365 + $0x54] sm:$0xf]
        %v381 = vld [vmem:[%s365 + $0x58] sm:$0xf]
        %v382 = vld [vmem:[%s365 + $0x60] sm:$0xf]
        %v383 = vld [vmem:[%s365 + $0x64] sm:$0xf]
        %v384 = vld [vmem:[%s365 + $0x6c] sm:$0xf]
        %v385 = vld [vmem:[%s365 + $0x70] sm:$0xf]
        %v386 = vld [vmem:[%s365 + $0x78] sm:$0xf]
        %v387 = vld [vmem:[%s365 + $0x7c] sm:$0xf]
        %v388 = vld [vmem:[%s365 + $0x84] sm:$0xf]
        %v389 = vld [vmem:[%s365 + $0x88] sm:$0xf]
        %v390 = vld [vmem:[%s365 + $0x90] sm:$0xf]
        %v391 = vld [vmem:[%s365 + $0x94] sm:$0xf]
        %v392 = vld [vmem:[%s365 + $0x9c] sm:$0xf]
        %v393 = vld [vmem:[%s365 + $0xa0] sm:$0xf]
        %v394 = vld [vmem:[%s365 + $0xa8] sm:$0xf]
        %v395 = vld [vmem:[%s365 + $0xac] sm:$0xf]
        %v396 = vld [vmem:[%s365 + $0xb4] sm:$0xf]
        %v397 = vld [vmem:[%s365 + $0xb8] sm:$0xf]
        %v398 = vld [vmem:[%s365 + $0x8] sm:$0x1]
        %v399 = vld [vmem:[%s365 + $0x14] sm:$0x1]
        %v400 = vld [vmem:[%s365 + $0x20] sm:$0x1]
        %v401 = vld [vmem:[%s365 + $0x2c] sm:$0x1]
        %v402 = vld [vmem:[%s365 + $0x38] sm:$0x1]
        %v403 = vld [vmem:[%s365 + $0x44] sm:$0x1]
        %v404 = vld [vmem:[%s365 + $0x50] sm:$0x1]
        %v405 = vld [vmem:[%s365 + $0x5c] sm:$0x1]
        %v406 = vld [vmem:[%s365 + $0x68] sm:$0x1]
        %v407 = vld [vmem:[%s365 + $0x74] sm:$0x1]
        %v408 = vld [vmem:[%s365 + $0x80] sm:$0x1]
        %v409 = vld [vmem:[%s365 + $0x8c] sm:$0x1]
        %v410 = vld [vmem:[%s365 + $0x98] sm:$0x1]
        %v411 = vld [vmem:[%s365 + $0xa4] sm:$0x1]
        %v412 = vld [vmem:[%s365 + $0xb0] sm:$0x1]
        %v413 = vld [vmem:[%s365 + $0xbc] sm:$0x1]
        %v414 = vld [vmem:[%s365] sm:$0xe]
        %v415 = vld [vmem:[%s365 + $0xc] sm:$0xe]
        %v416 = vld [vmem:[%s365 + $0x18] sm:$0xe]
        %v417 = vld [vmem:[%s365 + $0x24] sm:$0xe]
        %v418 = vld [vmem:[%s365 + $0x30] sm:$0xe]
        %v419 = vld [vmem:[%s365 + $0x3c] sm:$0xe]
        %v420 = vld [vmem:[%s365 + $0x48] sm:$0xe]
        %v421 = vld [vmem:[%s365 + $0x54] sm:$0xe]
        %v422 = vld [vmem:[%s365 + $0x60] sm:$0xe]
        %v423 = vld [vmem:[%s365 + $0x6c] sm:$0xe]
        %v424 = vld [vmem:[%s365 + $0x78] sm:$0xe]
        %v425 = vld [vmem:[%s365 + $0x84] sm:$0xe]
        %v426 = vld [vmem:[%s365 + $0x90] sm:$0xe]
        %v427 = vld [vmem:[%s365 + $0x9c] sm:$0xe]
        %v428 = vld [vmem:[%s365 + $0xa8] sm:$0xe]
        %v429 = vld [vmem:[%s365 + $0xb4] sm:$0xe]
        %v462 = vunpack.c.l.b16 %v230
        %v463 = vunpack.c.l.b16 %v231
        %v464 = vunpack.c.l.b16 %v232
        %v465 = vunpack.c.l.b16 %v233
        %v466 = vunpack.c.l.b16 %v234
        %v467 = vunpack.c.l.b16 %v235
        %v468 = vunpack.c.l.b16 %v236
        %v469 = vunpack.c.l.b16 %v237
        %v470 = vunpack.c.l.b16 %v238
        %v471 = vunpack.c.l.b16 %v239
        %v472 = vunpack.c.l.b16 %v240
        %v473 = vunpack.c.l.b16 %v241
        %v474 = vunpack.c.l.b16 %v242
        %v475 = vunpack.c.l.b16 %v243
        %v476 = vunpack.c.l.b16 %v244
        %v477 = vunpack.c.l.b16 %v245
        %v478 = vunpack.c.l.b16 %v246
        %v479 = vunpack.c.l.b16 %v247
        %v480 = vunpack.c.l.b16 %v248
        %v481 = vunpack.c.l.b16 %v249
        %v482 = vunpack.c.l.b16 %v250
        %v483 = vunpack.c.l.b16 %v251
        %v484 = vunpack.c.l.b16 %v252
        %v485 = vunpack.c.l.b16 %v253
        %v486 = vunpack.c.l.b16 %v254
        %v487 = vunpack.c.l.b16 %v255
        %v488 = vunpack.c.l.b16 %v256
        %v489 = vunpack.c.l.b16 %v257
        %v490 = vunpack.c.l.b16 %v258
        %v491 = vunpack.c.l.b16 %v259
        %v492 = vunpack.c.l.b16 %v260
        %v493 = vunpack.c.l.b16 %v261
        %v494 = vpack.c.b16 %v463, %v462
        %v495 = vpack.c.b16 %v465, %v464
        %v496 = vpack.c.b16 %v467, %v466
        %v497 = vpack.c.b16 %v469, %v468
        %v498 = vpack.c.b16 %v471, %v470
        %v499 = vpack.c.b16 %v473, %v472
        %v500 = vpack.c.b16 %v475, %v474
        %v501 = vpack.c.b16 %v477, %v476
        %v502 = vpack.c.b16 %v479, %v478
        %v503 = vpack.c.b16 %v481, %v480
        %v504 = vpack.c.b16 %v483, %v482
        %v505 = vpack.c.b16 %v485, %v484
        %v506 = vpack.c.b16 %v487, %v486
        %v507 = vpack.c.b16 %v489, %v488
        %v508 = vpack.c.b16 %v491, %v490
        %v509 = vpack.c.b16 %v493, %v492
        %v526 = vunpack.c.l.b16 %v262
        %v527 = vunpack.c.l.b16 %v263
        %v528 = vunpack.c.l.b16 %v264
        %v529 = vunpack.c.l.b16 %v265
        %v530 = vunpack.c.l.b16 %v266
        %v531 = vunpack.c.l.b16 %v267
        %v532 = vunpack.c.l.b16 %v268
        %v533 = vunpack.c.l.b16 %v269
        %v534 = vunpack.c.l.b16 %v270
        %v535 = vunpack.c.l.b16 %v271
        %v536 = vunpack.c.l.b16 %v272
        %v537 = vunpack.c.l.b16 %v273
        %v538 = vunpack.c.l.b16 %v274
        %v539 = vunpack.c.l.b16 %v275
        %v540 = vunpack.c.l.b16 %v276
        %v541 = vunpack.c.l.b16 %v277
        %v542 = vpack.c.b16 %v526, %v526
        %v543 = vpack.c.b16 %v527, %v527
        %v544 = vpack.c.b16 %v528, %v528
        %v545 = vpack.c.b16 %v529, %v529
        %v546 = vpack.c.b16 %v530, %v530
        %v547 = vpack.c.b16 %v531, %v531
        %v548 = vpack.c.b16 %v532, %v532
        %v549 = vpack.c.b16 %v533, %v533
        %v550 = vpack.c.b16 %v534, %v534
        %v551 = vpack.c.b16 %v535, %v535
        %v552 = vpack.c.b16 %v536, %v536
        %v553 = vpack.c.b16 %v537, %v537
        %v554 = vpack.c.b16 %v538, %v538
        %v555 = vpack.c.b16 %v539, %v539
        %v556 = vpack.c.b16 %v540, %v540
        %v557 = vpack.c.b16 %v541, %v541
        %vm558 = vsmask.f32 7424
        %v560 = vshrl.u32 %v494, 16
        %v562 = vshll.u32 %v494, 16
        %v564 = vrot.slane %v562, 1
        %v565 = vor.u32 %v560, %v564
        %v567 = vshll.u32 %v542, 16
        %v569 = vrot.slane %v567, 1
        %v570 = vsel %vm558, %v565, %v569
        %v572 = vshrl.u32 %v495, 16
        %v574 = vshll.u32 %v495, 16
        %v576 = vrot.slane %v574, 1
        %v577 = vor.u32 %v572, %v576
        %v579 = vshll.u32 %v543, 16
        %v581 = vrot.slane %v579, 1
        %v582 = vsel %vm558, %v577, %v581
        %v584 = vshrl.u32 %v496, 16
        %v586 = vshll.u32 %v496, 16
        %v588 = vrot.slane %v586, 1
        %v589 = vor.u32 %v584, %v588
        %v591 = vshll.u32 %v544, 16
        %v593 = vrot.slane %v591, 1
        %v594 = vsel %vm558, %v589, %v593
        %v596 = vshrl.u32 %v497, 16
        %v598 = vshll.u32 %v497, 16
        %v600 = vrot.slane %v598, 1
        %v601 = vor.u32 %v596, %v600
        %v603 = vshll.u32 %v545, 16
        %v605 = vrot.slane %v603, 1
        %v606 = vsel %vm558, %v601, %v605
        %v608 = vshrl.u32 %v498, 16
        %v610 = vshll.u32 %v498, 16
        %v612 = vrot.slane %v610, 1
        %v613 = vor.u32 %v608, %v612
        %v615 = vshll.u32 %v546, 16
        %v617 = vrot.slane %v615, 1
        %v618 = vsel %vm558, %v613, %v617
        %v620 = vshrl.u32 %v499, 16
        %v622 = vshll.u32 %v499, 16
        %v624 = vrot.slane %v622, 1
        %v625 = vor.u32 %v620, %v624
        %v627 = vshll.u32 %v547, 16
        %v629 = vrot.slane %v627, 1
        %v630 = vsel %vm558, %v625, %v629
        %v632 = vshrl.u32 %v500, 16
        %v634 = vshll.u32 %v500, 16
        %v636 = vrot.slane %v634, 1
        %v637 = vor.u32 %v632, %v636
        %v639 = vshll.u32 %v548, 16
        %v641 = vrot.slane %v639, 1
        %v642 = vsel %vm558, %v637, %v641
        %v644 = vshrl.u32 %v501, 16
        %v646 = vshll.u32 %v501, 16
        %v648 = vrot.slane %v646, 1
        %v649 = vor.u32 %v644, %v648
        %v651 = vshll.u32 %v549, 16
        %v653 = vrot.slane %v651, 1
        %v654 = vsel %vm558, %v649, %v653
        %v656 = vshrl.u32 %v502, 16
        %v658 = vshll.u32 %v502, 16
        %v660 = vrot.slane %v658, 1
        %v661 = vor.u32 %v656, %v660
        %v663 = vshll.u32 %v550, 16
        %v665 = vrot.slane %v663, 1
        %v666 = vsel %vm558, %v661, %v665
        %v668 = vshrl.u32 %v503, 16
        %v670 = vshll.u32 %v503, 16
        %v672 = vrot.slane %v670, 1
        %v673 = vor.u32 %v668, %v672
        %v675 = vshll.u32 %v551, 16
        %v677 = vrot.slane %v675, 1
        %v678 = vsel %vm558, %v673, %v677
        %v680 = vshrl.u32 %v504, 16
        %v682 = vshll.u32 %v504, 16
        %v684 = vrot.slane %v682, 1
        %v685 = vor.u32 %v680, %v684
        %v687 = vshll.u32 %v552, 16
        %v689 = vrot.slane %v687, 1
        %v690 = vsel %vm558, %v685, %v689
        %v692 = vshrl.u32 %v505, 16
        %v694 = vshll.u32 %v505, 16
        %v696 = vrot.slane %v694, 1
        %v697 = vor.u32 %v692, %v696
        %v699 = vshll.u32 %v553, 16
        %v701 = vrot.slane %v699, 1
        %v702 = vsel %vm558, %v697, %v701
        %v704 = vshrl.u32 %v506, 16
        %v706 = vshll.u32 %v506, 16
        %v708 = vrot.slane %v706, 1
        %v709 = vor.u32 %v704, %v708
        %v711 = vshll.u32 %v554, 16
        %v713 = vrot.slane %v711, 1
        %v714 = vsel %vm558, %v709, %v713
        %v716 = vshrl.u32 %v507, 16
        %v718 = vshll.u32 %v507, 16
        %v720 = vrot.slane %v718, 1
        %v721 = vor.u32 %v716, %v720
        %v723 = vshll.u32 %v555, 16
        %v725 = vrot.slane %v723, 1
        %v726 = vsel %vm558, %v721, %v725
        %v728 = vshrl.u32 %v508, 16
        %v730 = vshll.u32 %v508, 16
        %v732 = vrot.slane %v730, 1
        %v733 = vor.u32 %v728, %v732
        %v735 = vshll.u32 %v556, 16
        %v737 = vrot.slane %v735, 1
        %v738 = vsel %vm558, %v733, %v737
        %v740 = vshrl.u32 %v509, 16
        %v742 = vshll.u32 %v509, 16
        %v744 = vrot.slane %v742, 1
        %v745 = vor.u32 %v740, %v744
        %v747 = vshll.u32 %v557, 16
        %v749 = vrot.slane %v747, 1
        %v750 = vsel %vm558, %v745, %v749
        %751 = vrot.lane.b32.xlu0 %v570, 4
        %v752 = vpop.permute.xlu0 %751
        %753 = vrot.lane.b32.xlu0 %v582, 4
        %v754 = vpop.permute.xlu0 %753
        %755 = vrot.lane.b32.xlu0 %v594, 4
        %v756 = vpop.permute.xlu0 %755
        %757 = vrot.lane.b32.xlu0 %v606, 4
        %v758 = vpop.permute.xlu0 %757
        %759 = vrot.lane.b32.xlu0 %v618, 4
        %v760 = vpop.permute.xlu0 %759
        %761 = vrot.lane.b32.xlu0 %v630, 4
        %v762 = vpop.permute.xlu0 %761
        %763 = vrot.lane.b32.xlu0 %v642, 4
        %v764 = vpop.permute.xlu0 %763
        %765 = vrot.lane.b32.xlu0 %v654, 4
        %v766 = vpop.permute.xlu0 %765
        %767 = vrot.lane.b32.xlu0 %v666, 4
        %v768 = vpop.permute.xlu0 %767
        %769 = vrot.lane.b32.xlu0 %v678, 4
        %v770 = vpop.permute.xlu0 %769
        %771 = vrot.lane.b32.xlu0 %v690, 4
        %v772 = vpop.permute.xlu0 %771
        %773 = vrot.lane.b32.xlu0 %v702, 4
        %v774 = vpop.permute.xlu0 %773
        %775 = vrot.lane.b32.xlu0 %v714, 4
        %v776 = vpop.permute.xlu0 %775
        %777 = vrot.lane.b32.xlu0 %v726, 4
        %v778 = vpop.permute.xlu0 %777
        %779 = vrot.lane.b32.xlu0 %v738, 4
        %v780 = vpop.permute.xlu0 %779
        %781 = vrot.lane.b32.xlu0 %v750, 4
        %v782 = vpop.permute.xlu0 %781
        %v799 = vunpack.c.l.b16 %v278
        %v800 = vunpack.c.l.b16 %v279
        %v801 = vunpack.c.l.b16 %v280
        %v802 = vunpack.c.l.b16 %v281
        %v803 = vunpack.c.l.b16 %v282
        %v804 = vunpack.c.l.b16 %v283
        %v805 = vunpack.c.l.b16 %v284
        %v806 = vunpack.c.l.b16 %v285
        %v807 = vunpack.c.l.b16 %v286
        %v808 = vunpack.c.l.b16 %v287
        %v809 = vunpack.c.l.b16 %v288
        %v810 = vunpack.c.l.b16 %v289
        %v811 = vunpack.c.l.b16 %v290
        %v812 = vunpack.c.l.b16 %v291
        %v813 = vunpack.c.l.b16 %v292
        %v814 = vunpack.c.l.b16 %v293
        %v815 = vpack.c.b16 %v463, %v799
        %v816 = vpack.c.b16 %v465, %v800
        %v817 = vpack.c.b16 %v467, %v801
        %v818 = vpack.c.b16 %v469, %v802
        %v819 = vpack.c.b16 %v471, %v803
        %v820 = vpack.c.b16 %v473, %v804
        %v821 = vpack.c.b16 %v475, %v805
        %v822 = vpack.c.b16 %v477, %v806
        %v823 = vpack.c.b16 %v479, %v807
        %v824 = vpack.c.b16 %v481, %v808
        %v825 = vpack.c.b16 %v483, %v809
        %v826 = vpack.c.b16 %v485, %v810
        %v827 = vpack.c.b16 %v487, %v811
        %v828 = vpack.c.b16 %v489, %v812
        %v829 = vpack.c.b16 %v491, %v813
        %v830 = vpack.c.b16 %v493, %v814
        %vm831 = vcmask 1046528
        %v832 = vrot.slane %v815, 1
        %v833 = vrot.slane %v542, 1
        %v834 = vsel %vm831, %v832, %v833
        %v835 = vrot.slane %v816, 1
        %v836 = vrot.slane %v543, 1
        %v837 = vsel %vm831, %v835, %v836
        %v838 = vrot.slane %v817, 1
        %v839 = vrot.slane %v544, 1
        %v840 = vsel %vm831, %v838, %v839
        %v841 = vrot.slane %v818, 1
        %v842 = vrot.slane %v545, 1
        %v843 = vsel %vm831, %v841, %v842
        %v844 = vrot.slane %v819, 1
        %v845 = vrot.slane %v546, 1
        %v846 = vsel %vm831, %v844, %v845
        %v847 = vrot.slane %v820, 1
        %v848 = vrot.slane %v547, 1
        %v849 = vsel %vm831, %v847, %v848
        %v850 = vrot.slane %v821, 1
        %v851 = vrot.slane %v548, 1
        %v852 = vsel %vm831, %v850, %v851
        %v853 = vrot.slane %v822, 1
        %v854 = vrot.slane %v549, 1
        %v855 = vsel %vm831, %v853, %v854
        %v856 = vrot.slane %v823, 1
        %v857 = vrot.slane %v550, 1
        %v858 = vsel %vm831, %v856, %v857
        %v859 = vrot.slane %v824, 1
        %v860 = vrot.slane %v551, 1
        %v861 = vsel %vm831, %v859, %v860
        %v862 = vrot.slane %v825, 1
        %v863 = vrot.slane %v552, 1
        %v864 = vsel %vm831, %v862, %v863
        %v865 = vrot.slane %v826, 1
        %v866 = vrot.slane %v553, 1
        %v867 = vsel %vm831, %v865, %v866
        %v868 = vrot.slane %v827, 1
        %v869 = vrot.slane %v554, 1
        %v870 = vsel %vm831, %v868, %v869
        %v871 = vrot.slane %v828, 1
        %v872 = vrot.slane %v555, 1
        %v873 = vsel %vm831, %v871, %v872
        %v874 = vrot.slane %v829, 1
        %v875 = vrot.slane %v556, 1
        %v876 = vsel %vm831, %v874, %v875
        %v877 = vrot.slane %v830, 1
        %v878 = vrot.slane %v557, 1
        %v879 = vsel %vm831, %v877, %v878
        %880 = vrot.lane.b32.xlu0 %v834, 8
        %v881 = vpop.permute.xlu0 %880
        %882 = vrot.lane.b32.xlu0 %v837, 8
        %v883 = vpop.permute.xlu0 %882
        %884 = vrot.lane.b32.xlu0 %v840, 8
        %v885 = vpop.permute.xlu0 %884
        %886 = vrot.lane.b32.xlu0 %v843, 8
        %v887 = vpop.permute.xlu0 %886
        %888 = vrot.lane.b32.xlu0 %v846, 8
        %v889 = vpop.permute.xlu0 %888
        %890 = vrot.lane.b32.xlu0 %v849, 8
        %v891 = vpop.permute.xlu0 %890
        %892 = vrot.lane.b32.xlu0 %v852, 8
        %v893 = vpop.permute.xlu0 %892
        %894 = vrot.lane.b32.xlu0 %v855, 8
        %v895 = vpop.permute.xlu0 %894
        %896 = vrot.lane.b32.xlu0 %v858, 8
        %v897 = vpop.permute.xlu0 %896
        %898 = vrot.lane.b32.xlu0 %v861, 8
        %v899 = vpop.permute.xlu0 %898
        %900 = vrot.lane.b32.xlu0 %v864, 8
        %v901 = vpop.permute.xlu0 %900
        %902 = vrot.lane.b32.xlu0 %v867, 8
        %v903 = vpop.permute.xlu0 %902
        %904 = vrot.lane.b32.xlu0 %v870, 8
        %v905 = vpop.permute.xlu0 %904
        %906 = vrot.lane.b32.xlu0 %v873, 8
        %v907 = vpop.permute.xlu0 %906
        %908 = vrot.lane.b32.xlu0 %v876, 8
        %v909 = vpop.permute.xlu0 %908
        %910 = vrot.lane.b32.xlu0 %v879, 8
        %v911 = vpop.permute.xlu0 %910
        %v944 = vunpack.c.l.b16 %v298
        %v945 = vunpack.c.l.b16 %v299
        %v946 = vunpack.c.l.b16 %v300
        %v947 = vunpack.c.l.b16 %v301
        %v948 = vunpack.c.l.b16 %v302
        %v949 = vunpack.c.l.b16 %v303
        %v950 = vunpack.c.l.b16 %v304
        %v951 = vunpack.c.l.b16 %v305
        %v952 = vunpack.c.l.b16 %v306
        %v953 = vunpack.c.l.b16 %v307
        %v954 = vunpack.c.l.b16 %v308
        %v955 = vunpack.c.l.b16 %v309
        %v956 = vunpack.c.l.b16 %v310
        %v957 = vunpack.c.l.b16 %v311
        %v958 = vunpack.c.l.b16 %v312
        %v959 = vunpack.c.l.b16 %v313
        %v960 = vunpack.c.l.b16 %v314
        %v961 = vunpack.c.l.b16 %v315
        %v962 = vunpack.c.l.b16 %v316
        %v963 = vunpack.c.l.b16 %v317
        %v964 = vunpack.c.l.b16 %v318
        %v965 = vunpack.c.l.b16 %v319
        %v966 = vunpack.c.l.b16 %v320
        %v967 = vunpack.c.l.b16 %v321
        %v968 = vunpack.c.l.b16 %v322
        %v969 = vunpack.c.l.b16 %v323
        %v970 = vunpack.c.l.b16 %v324
        %v971 = vunpack.c.l.b16 %v325
        %v972 = vunpack.c.l.b16 %v326
        %v973 = vunpack.c.l.b16 %v327
        %v974 = vunpack.c.l.b16 %v328
        %v975 = vunpack.c.l.b16 %v329
        %v976 = vpack.c.b16 %v945, %v944
        %v977 = vpack.c.b16 %v947, %v946
        %v978 = vpack.c.b16 %v949, %v948
        %v979 = vpack.c.b16 %v951, %v950
        %v980 = vpack.c.b16 %v953, %v952
        %v981 = vpack.c.b16 %v955, %v954
        %v982 = vpack.c.b16 %v957, %v956
        %v983 = vpack.c.b16 %v959, %v958
        %v984 = vpack.c.b16 %v961, %v960
        %v985 = vpack.c.b16 %v963, %v962
        %v986 = vpack.c.b16 %v965, %v964
        %v987 = vpack.c.b16 %v967, %v966
        %v988 = vpack.c.b16 %v969, %v968
        %v989 = vpack.c.b16 %v971, %v970
        %v990 = vpack.c.b16 %v973, %v972
        %v991 = vpack.c.b16 %v975, %v974
        %992 = vrot.lane.b32.xlu0 %v976, 12
        %v993 = vpop.permute.xlu0 %992
        %994 = vrot.lane.b32.xlu0 %v977, 12
        %v995 = vpop.permute.xlu0 %994
        %996 = vrot.lane.b32.xlu0 %v978, 12
        %v997 = vpop.permute.xlu0 %996
        %998 = vrot.lane.b32.xlu0 %v979, 12
        %v999 = vpop.permute.xlu0 %998
        %1000 = vrot.lane.b32.xlu0 %v980, 12
        %v1001 = vpop.permute.xlu0 %1000
        %1002 = vrot.lane.b32.xlu0 %v981, 12
        %v1003 = vpop.permute.xlu0 %1002
        %1004 = vrot.lane.b32.xlu0 %v982, 12
        %v1005 = vpop.permute.xlu0 %1004
        %1006 = vrot.lane.b32.xlu0 %v983, 12
        %v1007 = vpop.permute.xlu0 %1006
        %1008 = vrot.lane.b32.xlu0 %v984, 12
        %v1009 = vpop.permute.xlu0 %1008
        %1010 = vrot.lane.b32.xlu0 %v985, 12
        %v1011 = vpop.permute.xlu0 %1010
        %1012 = vrot.lane.b32.xlu0 %v986, 12
        %v1013 = vpop.permute.xlu0 %1012
        %1014 = vrot.lane.b32.xlu0 %v987, 12
        %v1015 = vpop.permute.xlu0 %1014
        %1016 = vrot.lane.b32.xlu0 %v988, 12
        %v1017 = vpop.permute.xlu0 %1016
        %1018 = vrot.lane.b32.xlu0 %v989, 12
        %v1019 = vpop.permute.xlu0 %1018
        %1020 = vrot.lane.b32.xlu0 %v990, 12
        %v1021 = vpop.permute.xlu0 %1020
        %1022 = vrot.lane.b32.xlu0 %v991, 12
        %v1023 = vpop.permute.xlu0 %1022
        %v1040 = vunpack.c.l.b16 %v330
        %v1041 = vunpack.c.l.b16 %v331
        %v1042 = vunpack.c.l.b16 %v332
        %v1043 = vunpack.c.l.b16 %v333
        %v1044 = vunpack.c.l.b16 %v334
        %v1045 = vunpack.c.l.b16 %v335
        %v1046 = vunpack.c.l.b16 %v336
        %v1047 = vunpack.c.l.b16 %v337
        %v1048 = vunpack.c.l.b16 %v338
        %v1049 = vunpack.c.l.b16 %v339
        %v1050 = vunpack.c.l.b16 %v340
        %v1051 = vunpack.c.l.b16 %v341
        %v1052 = vunpack.c.l.b16 %v342
        %v1053 = vunpack.c.l.b16 %v343
        %v1054 = vunpack.c.l.b16 %v344
        %v1055 = vunpack.c.l.b16 %v345
        %v1056 = vpack.c.b16 %v1040, %v1040
        %v1057 = vpack.c.b16 %v1041, %v1041
        %v1058 = vpack.c.b16 %v1042, %v1042
        %v1059 = vpack.c.b16 %v1043, %v1043
        %v1060 = vpack.c.b16 %v1044, %v1044
        %v1061 = vpack.c.b16 %v1045, %v1045
        %v1062 = vpack.c.b16 %v1046, %v1046
        %v1063 = vpack.c.b16 %v1047, %v1047
        %v1064 = vpack.c.b16 %v1048, %v1048
        %v1065 = vpack.c.b16 %v1049, %v1049
        %v1066 = vpack.c.b16 %v1050, %v1050
        %v1067 = vpack.c.b16 %v1051, %v1051
        %v1068 = vpack.c.b16 %v1052, %v1052
        %v1069 = vpack.c.b16 %v1053, %v1053
        %v1070 = vpack.c.b16 %v1054, %v1054
        %v1071 = vpack.c.b16 %v1055, %v1055
        %v1073 = vshrl.u32 %v976, 16
        %v1075 = vshll.u32 %v976, 16
        %v1077 = vrot.slane %v1075, 1
        %v1078 = vor.u32 %v1073, %v1077
        %v1080 = vshll.u32 %v1056, 16
        %v1082 = vrot.slane %v1080, 1
        %v1083 = vsel %vm558, %v1078, %v1082
        %v1085 = vshrl.u32 %v977, 16
        %v1087 = vshll.u32 %v977, 16
        %v1089 = vrot.slane %v1087, 1
        %v1090 = vor.u32 %v1085, %v1089
        %v1092 = vshll.u32 %v1057, 16
        %v1094 = vrot.slane %v1092, 1
        %v1095 = vsel %vm558, %v1090, %v1094
        %v1097 = vshrl.u32 %v978, 16
        %v1099 = vshll.u32 %v978, 16
        %v1101 = vrot.slane %v1099, 1
        %v1102 = vor.u32 %v1097, %v1101
        %v1104 = vshll.u32 %v1058, 16
        %v1106 = vrot.slane %v1104, 1
        %v1107 = vsel %vm558, %v1102, %v1106
        %v1109 = vshrl.u32 %v979, 16
        %v1111 = vshll.u32 %v979, 16
        %v1113 = vrot.slane %v1111, 1
        %v1114 = vor.u32 %v1109, %v1113
        %v1116 = vshll.u32 %v1059, 16
        %v1118 = vrot.slane %v1116, 1
        %v1119 = vsel %vm558, %v1114, %v1118
        %v1121 = vshrl.u32 %v980, 16
        %v1123 = vshll.u32 %v980, 16
        %v1125 = vrot.slane %v1123, 1
        %v1126 = vor.u32 %v1121, %v1125
        %v1128 = vshll.u32 %v1060, 16
        %v1130 = vrot.slane %v1128, 1
        %v1131 = vsel %vm558, %v1126, %v1130
        %v1133 = vshrl.u32 %v981, 16
        %v1135 = vshll.u32 %v981, 16
        %v1137 = vrot.slane %v1135, 1
        %v1138 = vor.u32 %v1133, %v1137
        %v1140 = vshll.u32 %v1061, 16
        %v1142 = vrot.slane %v1140, 1
        %v1143 = vsel %vm558, %v1138, %v1142
        %v1145 = vshrl.u32 %v982, 16
        %v1147 = vshll.u32 %v982, 16
        %v1149 = vrot.slane %v1147, 1
        %v1150 = vor.u32 %v1145, %v1149
        %v1152 = vshll.u32 %v1062, 16
        %v1154 = vrot.slane %v1152, 1
        %v1155 = vsel %vm558, %v1150, %v1154
        %v1157 = vshrl.u32 %v983, 16
        %v1159 = vshll.u32 %v983, 16
        %v1161 = vrot.slane %v1159, 1
        %v1162 = vor.u32 %v1157, %v1161
        %v1164 = vshll.u32 %v1063, 16
        %v1166 = vrot.slane %v1164, 1
        %v1167 = vsel %vm558, %v1162, %v1166
        %v1169 = vshrl.u32 %v984, 16
        %v1171 = vshll.u32 %v984, 16
        %v1173 = vrot.slane %v1171, 1
        %v1174 = vor.u32 %v1169, %v1173
        %v1176 = vshll.u32 %v1064, 16
        %v1178 = vrot.slane %v1176, 1
        %v1179 = vsel %vm558, %v1174, %v1178
        %v1181 = vshrl.u32 %v985, 16
        %v1183 = vshll.u32 %v985, 16
        %v1185 = vrot.slane %v1183, 1
        %v1186 = vor.u32 %v1181, %v1185
        %v1188 = vshll.u32 %v1065, 16
        %v1190 = vrot.slane %v1188, 1
        %v1191 = vsel %vm558, %v1186, %v1190
        %v1193 = vshrl.u32 %v986, 16
        %v1195 = vshll.u32 %v986, 16
        %v1197 = vrot.slane %v1195, 1
        %v1198 = vor.u32 %v1193, %v1197
        %v1200 = vshll.u32 %v1066, 16
        %v1202 = vrot.slane %v1200, 1
        %v1203 = vsel %vm558, %v1198, %v1202
        %v1205 = vshrl.u32 %v987, 16
        %v1207 = vshll.u32 %v987, 16
        %v1209 = vrot.slane %v1207, 1
        %v1210 = vor.u32 %v1205, %v1209
        %v1212 = vshll.u32 %v1067, 16
        %v1214 = vrot.slane %v1212, 1
        %v1215 = vsel %vm558, %v1210, %v1214
        %v1217 = vshrl.u32 %v988, 16
        %v1219 = vshll.u32 %v988, 16
        %v1221 = vrot.slane %v1219, 1
        %v1222 = vor.u32 %v1217, %v1221
        %v1224 = vshll.u32 %v1068, 16
        %v1226 = vrot.slane %v1224, 1
        %v1227 = vsel %vm558, %v1222, %v1226
        %v1229 = vshrl.u32 %v989, 16
        %v1231 = vshll.u32 %v989, 16
        %v1233 = vrot.slane %v1231, 1
        %v1234 = vor.u32 %v1229, %v1233
        %v1236 = vshll.u32 %v1069, 16
        %v1238 = vrot.slane %v1236, 1
        %v1239 = vsel %vm558, %v1234, %v1238
        %v1241 = vshrl.u32 %v990, 16
        %v1243 = vshll.u32 %v990, 16
        %v1245 = vrot.slane %v1243, 1
        %v1246 = vor.u32 %v1241, %v1245
        %v1248 = vshll.u32 %v1070, 16
        %v1250 = vrot.slane %v1248, 1
        %v1251 = vsel %vm558, %v1246, %v1250
        %v1253 = vshrl.u32 %v991, 16
        %v1255 = vshll.u32 %v991, 16
        %v1257 = vrot.slane %v1255, 1
        %v1258 = vor.u32 %v1253, %v1257
        %v1260 = vshll.u32 %v1071, 16
        %v1262 = vrot.slane %v1260, 1
        %v1263 = vsel %vm558, %v1258, %v1262
        %1264 = vrot.lane.b32.xlu0 %v1083, 16
        %v1265 = vpop.permute.xlu0 %1264
        %1266 = vrot.lane.b32.xlu0 %v1095, 16
        %v1267 = vpop.permute.xlu0 %1266
        %1268 = vrot.lane.b32.xlu0 %v1107, 16
        %v1269 = vpop.permute.xlu0 %1268
        %1270 = vrot.lane.b32.xlu0 %v1119, 16
        %v1271 = vpop.permute.xlu0 %1270
        %1272 = vrot.lane.b32.xlu0 %v1131, 16
        %v1273 = vpop.permute.xlu0 %1272
        %1274 = vrot.lane.b32.xlu0 %v1143, 16
        %v1275 = vpop.permute.xlu0 %1274
        %1276 = vrot.lane.b32.xlu0 %v1155, 16
        %v1277 = vpop.permute.xlu0 %1276
        %1278 = vrot.lane.b32.xlu0 %v1167, 16
        %v1279 = vpop.permute.xlu0 %1278
        %1280 = vrot.lane.b32.xlu0 %v1179, 16
        %v1281 = vpop.permute.xlu0 %1280
        %1282 = vrot.lane.b32.xlu0 %v1191, 16
        %v1283 = vpop.permute.xlu0 %1282
        %1284 = vrot.lane.b32.xlu0 %v1203, 16
        %v1285 = vpop.permute.xlu0 %1284
        %1286 = vrot.lane.b32.xlu0 %v1215, 16
        %v1287 = vpop.permute.xlu0 %1286
        %1288 = vrot.lane.b32.xlu0 %v1227, 16
        %v1289 = vpop.permute.xlu0 %1288
        %1290 = vrot.lane.b32.xlu0 %v1239, 16
        %v1291 = vpop.permute.xlu0 %1290
        %1292 = vrot.lane.b32.xlu0 %v1251, 16
        %v1293 = vpop.permute.xlu0 %1292
        %1294 = vrot.lane.b32.xlu0 %v1263, 16
        %v1295 = vpop.permute.xlu0 %1294
        %v1312 = vunpack.c.l.b16 %v346
        %v1313 = vunpack.c.l.b16 %v347
        %v1314 = vunpack.c.l.b16 %v348
        %v1315 = vunpack.c.l.b16 %v349
        %v1316 = vunpack.c.l.b16 %v350
        %v1317 = vunpack.c.l.b16 %v351
        %v1318 = vunpack.c.l.b16 %v352
        %v1319 = vunpack.c.l.b16 %v353
        %v1320 = vunpack.c.l.b16 %v354
        %v1321 = vunpack.c.l.b16 %v355
        %v1322 = vunpack.c.l.b16 %v356
        %v1323 = vunpack.c.l.b16 %v357
        %v1324 = vunpack.c.l.b16 %v358
        %v1325 = vunpack.c.l.b16 %v359
        %v1326 = vunpack.c.l.b16 %v360
        %v1327 = vunpack.c.l.b16 %v361
        %v1328 = vpack.c.b16 %v945, %v1312
        %v1329 = vpack.c.b16 %v947, %v1313
        %v1330 = vpack.c.b16 %v949, %v1314
        %v1331 = vpack.c.b16 %v951, %v1315
        %v1332 = vpack.c.b16 %v953, %v1316
        %v1333 = vpack.c.b16 %v955, %v1317
        %v1334 = vpack.c.b16 %v957, %v1318
        %v1335 = vpack.c.b16 %v959, %v1319
        %v1336 = vpack.c.b16 %v961, %v1320
        %v1337 = vpack.c.b16 %v963, %v1321
        %v1338 = vpack.c.b16 %v965, %v1322
        %v1339 = vpack.c.b16 %v967, %v1323
        %v1340 = vpack.c.b16 %v969, %v1324
        %v1341 = vpack.c.b16 %v971, %v1325
        %v1342 = vpack.c.b16 %v973, %v1326
        %v1343 = vpack.c.b16 %v975, %v1327
        %v1344 = vrot.slane %v1328, 1
        %v1345 = vrot.slane %v1056, 1
        %v1346 = vsel %vm831, %v1344, %v1345
        %v1347 = vrot.slane %v1329, 1
        %v1348 = vrot.slane %v1057, 1
        %v1349 = vsel %vm831, %v1347, %v1348
        %v1350 = vrot.slane %v1330, 1
        %v1351 = vrot.slane %v1058, 1
        %v1352 = vsel %vm831, %v1350, %v1351
        %v1353 = vrot.slane %v1331, 1
        %v1354 = vrot.slane %v1059, 1
        %v1355 = vsel %vm831, %v1353, %v1354
        %v1356 = vrot.slane %v1332, 1
        %v1357 = vrot.slane %v1060, 1
        %v1358 = vsel %vm831, %v1356, %v1357
        %v1359 = vrot.slane %v1333, 1
        %v1360 = vrot.slane %v1061, 1
        %v1361 = vsel %vm831, %v1359, %v1360
        %v1362 = vrot.slane %v1334, 1
        %v1363 = vrot.slane %v1062, 1
        %v1364 = vsel %vm831, %v1362, %v1363
        %v1365 = vrot.slane %v1335, 1
        %v1366 = vrot.slane %v1063, 1
        %v1367 = vsel %vm831, %v1365, %v1366
        %v1368 = vrot.slane %v1336, 1
        %v1369 = vrot.slane %v1064, 1
        %v1370 = vsel %vm831, %v1368, %v1369
        %v1371 = vrot.slane %v1337, 1
        %v1372 = vrot.slane %v1065, 1
        %v1373 = vsel %vm831, %v1371, %v1372
        %v1374 = vrot.slane %v1338, 1
        %v1375 = vrot.slane %v1066, 1
        %v1376 = vsel %vm831, %v1374, %v1375
        %v1377 = vrot.slane %v1339, 1
        %v1378 = vrot.slane %v1067, 1
        %v1379 = vsel %vm831, %v1377, %v1378
        %v1380 = vrot.slane %v1340, 1
        %v1381 = vrot.slane %v1068, 1
        %v1382 = vsel %vm831, %v1380, %v1381
        %v1383 = vrot.slane %v1341, 1
        %v1384 = vrot.slane %v1069, 1
        %v1385 = vsel %vm831, %v1383, %v1384
        %v1386 = vrot.slane %v1342, 1
        %v1387 = vrot.slane %v1070, 1
        %v1388 = vsel %vm831, %v1386, %v1387
        %v1389 = vrot.slane %v1343, 1
        %v1390 = vrot.slane %v1071, 1
        %v1391 = vsel %vm831, %v1389, %v1390
        %1392 = vrot.lane.b32.xlu0 %v1346, 20
        %v1393 = vpop.permute.xlu0 %1392
        %1394 = vrot.lane.b32.xlu0 %v1349, 20
        %v1395 = vpop.permute.xlu0 %1394
        %1396 = vrot.lane.b32.xlu0 %v1352, 20
        %v1397 = vpop.permute.xlu0 %1396
        %1398 = vrot.lane.b32.xlu0 %v1355, 20
        %v1399 = vpop.permute.xlu0 %1398
        %1400 = vrot.lane.b32.xlu0 %v1358, 20
        %v1401 = vpop.permute.xlu0 %1400
        %1402 = vrot.lane.b32.xlu0 %v1361, 20
        %v1403 = vpop.permute.xlu0 %1402
        %1404 = vrot.lane.b32.xlu0 %v1364, 20
        %v1405 = vpop.permute.xlu0 %1404
        %1406 = vrot.lane.b32.xlu0 %v1367, 20
        %v1407 = vpop.permute.xlu0 %1406
        %1408 = vrot.lane.b32.xlu0 %v1370, 20
        %v1409 = vpop.permute.xlu0 %1408
        %1410 = vrot.lane.b32.xlu0 %v1373, 20
        %v1411 = vpop.permute.xlu0 %1410
        %1412 = vrot.lane.b32.xlu0 %v1376, 20
        %v1413 = vpop.permute.xlu0 %1412
        %1414 = vrot.lane.b32.xlu0 %v1379, 20
        %v1415 = vpop.permute.xlu0 %1414
        %1416 = vrot.lane.b32.xlu0 %v1382, 20
        %v1417 = vpop.permute.xlu0 %1416
        %1418 = vrot.lane.b32.xlu0 %v1385, 20
        %v1419 = vpop.permute.xlu0 %1418
        %1420 = vrot.lane.b32.xlu0 %v1388, 20
        %v1421 = vpop.permute.xlu0 %1420
        %1422 = vrot.lane.b32.xlu0 %v1391, 20
        %v1423 = vpop.permute.xlu0 %1422
        %v1456 = vunpack.c.l.b16 %v366
        %v1457 = vunpack.c.l.b16 %v367
        %v1458 = vunpack.c.l.b16 %v368
        %v1459 = vunpack.c.l.b16 %v369
        %v1460 = vunpack.c.l.b16 %v370
        %v1461 = vunpack.c.l.b16 %v371
        %v1462 = vunpack.c.l.b16 %v372
        %v1463 = vunpack.c.l.b16 %v373
        %v1464 = vunpack.c.l.b16 %v374
        %v1465 = vunpack.c.l.b16 %v375
        %v1466 = vunpack.c.l.b16 %v376
        %v1467 = vunpack.c.l.b16 %v377
        %v1468 = vunpack.c.l.b16 %v378
        %v1469 = vunpack.c.l.b16 %v379
        %v1470 = vunpack.c.l.b16 %v380
        %v1471 = vunpack.c.l.b16 %v381
        %v1472 = vunpack.c.l.b16 %v382
        %v1473 = vunpack.c.l.b16 %v383
        %v1474 = vunpack.c.l.b16 %v384
        %v1475 = vunpack.c.l.b16 %v385
        %v1476 = vunpack.c.l.b16 %v386
        %v1477 = vunpack.c.l.b16 %v387
        %v1478 = vunpack.c.l.b16 %v388
        %v1479 = vunpack.c.l.b16 %v389
        %v1480 = vunpack.c.l.b16 %v390
        %v1481 = vunpack.c.l.b16 %v391
        %v1482 = vunpack.c.l.b16 %v392
        %v1483 = vunpack.c.l.b16 %v393
        %v1484 = vunpack.c.l.b16 %v394
        %v1485 = vunpack.c.l.b16 %v395
        %v1486 = vunpack.c.l.b16 %v396
        %v1487 = vunpack.c.l.b16 %v397
        %v1488 = vpack.c.b16 %v1457, %v1456
        %v1489 = vpack.c.b16 %v1459, %v1458
        %v1490 = vpack.c.b16 %v1461, %v1460
        %v1491 = vpack.c.b16 %v1463, %v1462
        %v1492 = vpack.c.b16 %v1465, %v1464
        %v1493 = vpack.c.b16 %v1467, %v1466
        %v1494 = vpack.c.b16 %v1469, %v1468
        %v1495 = vpack.c.b16 %v1471, %v1470
        %v1496 = vpack.c.b16 %v1473, %v1472
        %v1497 = vpack.c.b16 %v1475, %v1474
        %v1498 = vpack.c.b16 %v1477, %v1476
        %v1499 = vpack.c.b16 %v1479, %v1478
        %v1500 = vpack.c.b16 %v1481, %v1480
        %v1501 = vpack.c.b16 %v1483, %v1482
        %v1502 = vpack.c.b16 %v1485, %v1484
        %v1503 = vpack.c.b16 %v1487, %v1486
        %1504 = vrot.lane.b32.xlu0 %v1488, 24
        %v1505 = vpop.permute.xlu0 %1504
        %1506 = vrot.lane.b32.xlu0 %v1489, 24
        %v1507 = vpop.permute.xlu0 %1506
        %1508 = vrot.lane.b32.xlu0 %v1490, 24
        %v1509 = vpop.permute.xlu0 %1508
        %1510 = vrot.lane.b32.xlu0 %v1491, 24
        %v1511 = vpop.permute.xlu0 %1510
        %1512 = vrot.lane.b32.xlu0 %v1492, 24
        %v1513 = vpop.permute.xlu0 %1512
        %1514 = vrot.lane.b32.xlu0 %v1493, 24
        %v1515 = vpop.permute.xlu0 %1514
        %1516 = vrot.lane.b32.xlu0 %v1494, 24
        %v1517 = vpop.permute.xlu0 %1516
        %1518 = vrot.lane.b32.xlu0 %v1495, 24
        %v1519 = vpop.permute.xlu0 %1518
        %1520 = vrot.lane.b32.xlu0 %v1496, 24
        %v1521 = vpop.permute.xlu0 %1520
        %1522 = vrot.lane.b32.xlu0 %v1497, 24
        %v1523 = vpop.permute.xlu0 %1522
        %1524 = vrot.lane.b32.xlu0 %v1498, 24
        %v1525 = vpop.permute.xlu0 %1524
        %1526 = vrot.lane.b32.xlu0 %v1499, 24
        %v1527 = vpop.permute.xlu0 %1526
        %1528 = vrot.lane.b32.xlu0 %v1500, 24
        %v1529 = vpop.permute.xlu0 %1528
        %1530 = vrot.lane.b32.xlu0 %v1501, 24
        %v1531 = vpop.permute.xlu0 %1530
        %1532 = vrot.lane.b32.xlu0 %v1502, 24
        %v1533 = vpop.permute.xlu0 %1532
        %1534 = vrot.lane.b32.xlu0 %v1503, 24
        %v1535 = vpop.permute.xlu0 %1534
        %v1552 = vunpack.c.l.b16 %v398
        %v1553 = vunpack.c.l.b16 %v399
        %v1554 = vunpack.c.l.b16 %v400
        %v1555 = vunpack.c.l.b16 %v401
        %v1556 = vunpack.c.l.b16 %v402
        %v1557 = vunpack.c.l.b16 %v403
        %v1558 = vunpack.c.l.b16 %v404
        %v1559 = vunpack.c.l.b16 %v405
        %v1560 = vunpack.c.l.b16 %v406
        %v1561 = vunpack.c.l.b16 %v407
        %v1562 = vunpack.c.l.b16 %v408
        %v1563 = vunpack.c.l.b16 %v409
        %v1564 = vunpack.c.l.b16 %v410
        %v1565 = vunpack.c.l.b16 %v411
        %v1566 = vunpack.c.l.b16 %v412
        %v1567 = vunpack.c.l.b16 %v413
        %v1568 = vpack.c.b16 %v1552, %v1552
        %v1569 = vpack.c.b16 %v1553, %v1553
        %v1570 = vpack.c.b16 %v1554, %v1554
        %v1571 = vpack.c.b16 %v1555, %v1555
        %v1572 = vpack.c.b16 %v1556, %v1556
        %v1573 = vpack.c.b16 %v1557, %v1557
        %v1574 = vpack.c.b16 %v1558, %v1558
        %v1575 = vpack.c.b16 %v1559, %v1559
        %v1576 = vpack.c.b16 %v1560, %v1560
        %v1577 = vpack.c.b16 %v1561, %v1561
        %v1578 = vpack.c.b16 %v1562, %v1562
        %v1579 = vpack.c.b16 %v1563, %v1563
        %v1580 = vpack.c.b16 %v1564, %v1564
        %v1581 = vpack.c.b16 %v1565, %v1565
        %v1582 = vpack.c.b16 %v1566, %v1566
        %v1583 = vpack.c.b16 %v1567, %v1567
        %v1585 = vshrl.u32 %v1488, 16
        %v1587 = vshll.u32 %v1488, 16
        %v1589 = vrot.slane %v1587, 1
        %v1590 = vor.u32 %v1585, %v1589
        %v1592 = vshll.u32 %v1568, 16
        %v1594 = vrot.slane %v1592, 1
        %v1595 = vsel %vm558, %v1590, %v1594
        %v1597 = vshrl.u32 %v1489, 16
        %v1599 = vshll.u32 %v1489, 16
        %v1601 = vrot.slane %v1599, 1
        %v1602 = vor.u32 %v1597, %v1601
        %v1604 = vshll.u32 %v1569, 16
        %v1606 = vrot.slane %v1604, 1
        %v1607 = vsel %vm558, %v1602, %v1606
        %v1609 = vshrl.u32 %v1490, 16
        %v1611 = vshll.u32 %v1490, 16
        %v1613 = vrot.slane %v1611, 1
        %v1614 = vor.u32 %v1609, %v1613
        %v1616 = vshll.u32 %v1570, 16
        %v1618 = vrot.slane %v1616, 1
        %v1619 = vsel %vm558, %v1614, %v1618
        %v1621 = vshrl.u32 %v1491, 16
        %v1623 = vshll.u32 %v1491, 16
        %v1625 = vrot.slane %v1623, 1
        %v1626 = vor.u32 %v1621, %v1625
        %v1628 = vshll.u32 %v1571, 16
        %v1630 = vrot.slane %v1628, 1
        %v1631 = vsel %vm558, %v1626, %v1630
        %v1633 = vshrl.u32 %v1492, 16
        %v1635 = vshll.u32 %v1492, 16
        %v1637 = vrot.slane %v1635, 1
        %v1638 = vor.u32 %v1633, %v1637
        %v1640 = vshll.u32 %v1572, 16
        %v1642 = vrot.slane %v1640, 1
        %v1643 = vsel %vm558, %v1638, %v1642
        %v1645 = vshrl.u32 %v1493, 16
        %v1647 = vshll.u32 %v1493, 16
        %v1649 = vrot.slane %v1647, 1
        %v1650 = vor.u32 %v1645, %v1649
        %v1652 = vshll.u32 %v1573, 16
        %v1654 = vrot.slane %v1652, 1
        %v1655 = vsel %vm558, %v1650, %v1654
        %v1657 = vshrl.u32 %v1494, 16
        %v1659 = vshll.u32 %v1494, 16
        %v1661 = vrot.slane %v1659, 1
        %v1662 = vor.u32 %v1657, %v1661
        %v1664 = vshll.u32 %v1574, 16
        %v1666 = vrot.slane %v1664, 1
        %v1667 = vsel %vm558, %v1662, %v1666
        %v1669 = vshrl.u32 %v1495, 16
        %v1671 = vshll.u32 %v1495, 16
        %v1673 = vrot.slane %v1671, 1
        %v1674 = vor.u32 %v1669, %v1673
        %v1676 = vshll.u32 %v1575, 16
        %v1678 = vrot.slane %v1676, 1
        %v1679 = vsel %vm558, %v1674, %v1678
        %v1681 = vshrl.u32 %v1496, 16
        %v1683 = vshll.u32 %v1496, 16
        %v1685 = vrot.slane %v1683, 1
        %v1686 = vor.u32 %v1681, %v1685
        %v1688 = vshll.u32 %v1576, 16
        %v1690 = vrot.slane %v1688, 1
        %v1691 = vsel %vm558, %v1686, %v1690
        %v1693 = vshrl.u32 %v1497, 16
        %v1695 = vshll.u32 %v1497, 16
        %v1697 = vrot.slane %v1695, 1
        %v1698 = vor.u32 %v1693, %v1697
        %v1700 = vshll.u32 %v1577, 16
        %v1702 = vrot.slane %v1700, 1
        %v1703 = vsel %vm558, %v1698, %v1702
        %v1705 = vshrl.u32 %v1498, 16
        %v1707 = vshll.u32 %v1498, 16
        %v1709 = vrot.slane %v1707, 1
        %v1710 = vor.u32 %v1705, %v1709
        %v1712 = vshll.u32 %v1578, 16
        %v1714 = vrot.slane %v1712, 1
        %v1715 = vsel %vm558, %v1710, %v1714
        %v1717 = vshrl.u32 %v1499, 16
        %v1719 = vshll.u32 %v1499, 16
        %v1721 = vrot.slane %v1719, 1
        %v1722 = vor.u32 %v1717, %v1721
        %v1724 = vshll.u32 %v1579, 16
        %v1726 = vrot.slane %v1724, 1
        %v1727 = vsel %vm558, %v1722, %v1726
        %v1729 = vshrl.u32 %v1500, 16
        %v1731 = vshll.u32 %v1500, 16
        %v1733 = vrot.slane %v1731, 1
        %v1734 = vor.u32 %v1729, %v1733
        %v1736 = vshll.u32 %v1580, 16
        %v1738 = vrot.slane %v1736, 1
        %v1739 = vsel %vm558, %v1734, %v1738
        %v1741 = vshrl.u32 %v1501, 16
        %v1743 = vshll.u32 %v1501, 16
        %v1745 = vrot.slane %v1743, 1
        %v1746 = vor.u32 %v1741, %v1745
        %v1748 = vshll.u32 %v1581, 16
        %v1750 = vrot.slane %v1748, 1
        %v1751 = vsel %vm558, %v1746, %v1750
        %v1753 = vshrl.u32 %v1502, 16
        %v1755 = vshll.u32 %v1502, 16
        %v1757 = vrot.slane %v1755, 1
        %v1758 = vor.u32 %v1753, %v1757
        %v1760 = vshll.u32 %v1582, 16
        %v1762 = vrot.slane %v1760, 1
        %v1763 = vsel %vm558, %v1758, %v1762
        %v1765 = vshrl.u32 %v1503, 16
        %v1767 = vshll.u32 %v1503, 16
        %v1769 = vrot.slane %v1767, 1
        %v1770 = vor.u32 %v1765, %v1769
        %v1772 = vshll.u32 %v1583, 16
        %v1774 = vrot.slane %v1772, 1
        %v1775 = vsel %vm558, %v1770, %v1774
        %1776 = vrot.lane.b32.xlu0 %v1595, 28
        %v1777 = vpop.permute.xlu0 %1776
        %1778 = vrot.lane.b32.xlu0 %v1607, 28
        %v1779 = vpop.permute.xlu0 %1778
        %1780 = vrot.lane.b32.xlu0 %v1619, 28
        %v1781 = vpop.permute.xlu0 %1780
        %1782 = vrot.lane.b32.xlu0 %v1631, 28
        %v1783 = vpop.permute.xlu0 %1782
        %1784 = vrot.lane.b32.xlu0 %v1643, 28
        %v1785 = vpop.permute.xlu0 %1784
        %1786 = vrot.lane.b32.xlu0 %v1655, 28
        %v1787 = vpop.permute.xlu0 %1786
        %1788 = vrot.lane.b32.xlu0 %v1667, 28
        %v1789 = vpop.permute.xlu0 %1788
        %1790 = vrot.lane.b32.xlu0 %v1679, 28
        %v1791 = vpop.permute.xlu0 %1790
        %1792 = vrot.lane.b32.xlu0 %v1691, 28
        %v1793 = vpop.permute.xlu0 %1792
        %1794 = vrot.lane.b32.xlu0 %v1703, 28
        %v1795 = vpop.permute.xlu0 %1794
        %1796 = vrot.lane.b32.xlu0 %v1715, 28
        %v1797 = vpop.permute.xlu0 %1796
        %1798 = vrot.lane.b32.xlu0 %v1727, 28
        %v1799 = vpop.permute.xlu0 %1798
        %1800 = vrot.lane.b32.xlu0 %v1739, 28
        %v1801 = vpop.permute.xlu0 %1800
        %1802 = vrot.lane.b32.xlu0 %v1751, 28
        %v1803 = vpop.permute.xlu0 %1802
        %1804 = vrot.lane.b32.xlu0 %v1763, 28
        %v1805 = vpop.permute.xlu0 %1804
        %1806 = vrot.lane.b32.xlu0 %v1775, 28
        %v1807 = vpop.permute.xlu0 %1806
        %v1824 = vunpack.c.l.b16 %v414
        %v1825 = vunpack.c.l.b16 %v415
        %v1826 = vunpack.c.l.b16 %v416
        %v1827 = vunpack.c.l.b16 %v417
        %v1828 = vunpack.c.l.b16 %v418
        %v1829 = vunpack.c.l.b16 %v419
        %v1830 = vunpack.c.l.b16 %v420
        %v1831 = vunpack.c.l.b16 %v421
        %v1832 = vunpack.c.l.b16 %v422
        %v1833 = vunpack.c.l.b16 %v423
        %v1834 = vunpack.c.l.b16 %v424
        %v1835 = vunpack.c.l.b16 %v425
        %v1836 = vunpack.c.l.b16 %v426
        %v1837 = vunpack.c.l.b16 %v427
        %v1838 = vunpack.c.l.b16 %v428
        %v1839 = vunpack.c.l.b16 %v429
        %v1840 = vpack.c.b16 %v1457, %v1824
        %v1841 = vpack.c.b16 %v1459, %v1825
        %v1842 = vpack.c.b16 %v1461, %v1826
        %v1843 = vpack.c.b16 %v1463, %v1827
        %v1844 = vpack.c.b16 %v1465, %v1828
        %v1845 = vpack.c.b16 %v1467, %v1829
        %v1846 = vpack.c.b16 %v1469, %v1830
        %v1847 = vpack.c.b16 %v1471, %v1831
        %v1848 = vpack.c.b16 %v1473, %v1832
        %v1849 = vpack.c.b16 %v1475, %v1833
        %v1850 = vpack.c.b16 %v1477, %v1834
        %v1851 = vpack.c.b16 %v1479, %v1835
        %v1852 = vpack.c.b16 %v1481, %v1836
        %v1853 = vpack.c.b16 %v1483, %v1837
        %v1854 = vpack.c.b16 %v1485, %v1838
        %v1855 = vpack.c.b16 %v1487, %v1839
        %v1856 = vrot.slane %v1840, 1
        %v1857 = vrot.slane %v1568, 1
        %v1858 = vsel %vm831, %v1856, %v1857
        %v1859 = vrot.slane %v1841, 1
        %v1860 = vrot.slane %v1569, 1
        %v1861 = vsel %vm831, %v1859, %v1860
        %v1862 = vrot.slane %v1842, 1
        %v1863 = vrot.slane %v1570, 1
        %v1864 = vsel %vm831, %v1862, %v1863
        %v1865 = vrot.slane %v1843, 1
        %v1866 = vrot.slane %v1571, 1
        %v1867 = vsel %vm831, %v1865, %v1866
        %v1868 = vrot.slane %v1844, 1
        %v1869 = vrot.slane %v1572, 1
        %v1870 = vsel %vm831, %v1868, %v1869
        %v1871 = vrot.slane %v1845, 1
        %v1872 = vrot.slane %v1573, 1
        %v1873 = vsel %vm831, %v1871, %v1872
        %v1874 = vrot.slane %v1846, 1
        %v1875 = vrot.slane %v1574, 1
        %v1876 = vsel %vm831, %v1874, %v1875
        %v1877 = vrot.slane %v1847, 1
        %v1878 = vrot.slane %v1575, 1
        %v1879 = vsel %vm831, %v1877, %v1878
        %v1880 = vrot.slane %v1848, 1
        %v1881 = vrot.slane %v1576, 1
        %v1882 = vsel %vm831, %v1880, %v1881
        %v1883 = vrot.slane %v1849, 1
        %v1884 = vrot.slane %v1577, 1
        %v1885 = vsel %vm831, %v1883, %v1884
        %v1886 = vrot.slane %v1850, 1
        %v1887 = vrot.slane %v1578, 1
        %v1888 = vsel %vm831, %v1886, %v1887
        %v1889 = vrot.slane %v1851, 1
        %v1890 = vrot.slane %v1579, 1
        %v1891 = vsel %vm831, %v1889, %v1890
        %v1892 = vrot.slane %v1852, 1
        %v1893 = vrot.slane %v1580, 1
        %v1894 = vsel %vm831, %v1892, %v1893
        %v1895 = vrot.slane %v1853, 1
        %v1896 = vrot.slane %v1581, 1
        %v1897 = vsel %vm831, %v1895, %v1896
        %v1898 = vrot.slane %v1854, 1
        %v1899 = vrot.slane %v1582, 1
        %v1900 = vsel %vm831, %v1898, %v1899
        %v1901 = vrot.slane %v1855, 1
        %v1902 = vrot.slane %v1583, 1
        %v1903 = vsel %vm831, %v1901, %v1902
        %1904 = vrot.lane.b32.xlu0 %v1858, 32
        %v1905 = vpop.permute.xlu0 %1904
        %1906 = vrot.lane.b32.xlu0 %v1861, 32
        %v1907 = vpop.permute.xlu0 %1906
        %1908 = vrot.lane.b32.xlu0 %v1864, 32
        %v1909 = vpop.permute.xlu0 %1908
        %1910 = vrot.lane.b32.xlu0 %v1867, 32
        %v1911 = vpop.permute.xlu0 %1910
        %1912 = vrot.lane.b32.xlu0 %v1870, 32
        %v1913 = vpop.permute.xlu0 %1912
        %1914 = vrot.lane.b32.xlu0 %v1873, 32
        %v1915 = vpop.permute.xlu0 %1914
        %1916 = vrot.lane.b32.xlu0 %v1876, 32
        %v1917 = vpop.permute.xlu0 %1916
        %1918 = vrot.lane.b32.xlu0 %v1879, 32
        %v1919 = vpop.permute.xlu0 %1918
        %1920 = vrot.lane.b32.xlu0 %v1882, 32
        %v1921 = vpop.permute.xlu0 %1920
        %1922 = vrot.lane.b32.xlu0 %v1885, 32
        %v1923 = vpop.permute.xlu0 %1922
        %1924 = vrot.lane.b32.xlu0 %v1888, 32
        %v1925 = vpop.permute.xlu0 %1924
        %1926 = vrot.lane.b32.xlu0 %v1891, 32
        %v1927 = vpop.permute.xlu0 %1926
        %1928 = vrot.lane.b32.xlu0 %v1894, 32
        %v1929 = vpop.permute.xlu0 %1928
        %1930 = vrot.lane.b32.xlu0 %v1897, 32
        %v1931 = vpop.permute.xlu0 %1930
        %1932 = vrot.lane.b32.xlu0 %v1900, 32
        %v1933 = vpop.permute.xlu0 %1932
        %1934 = vrot.lane.b32.xlu0 %v1903, 32
        %v1935 = vpop.permute.xlu0 %1934
        %vm1936 = vcmask 31744
        %v1938 = vsel %vm1936, %v494, %v752
        %v1940 = vsel %vm1936, %v495, %v754
        %v1942 = vsel %vm1936, %v496, %v756
        %v1944 = vsel %vm1936, %v497, %v758
        %v1946 = vsel %vm1936, %v498, %v760
        %v1948 = vsel %vm1936, %v499, %v762
        %v1950 = vsel %vm1936, %v500, %v764
        %v1952 = vsel %vm1936, %v501, %v766
        %v1954 = vsel %vm1936, %v502, %v768
        %v1956 = vsel %vm1936, %v503, %v770
        %v1958 = vsel %vm1936, %v504, %v772
        %v1960 = vsel %vm1936, %v505, %v774
        %v1962 = vsel %vm1936, %v506, %v776
        %v1964 = vsel %vm1936, %v507, %v778
        %v1966 = vsel %vm1936, %v508, %v780
        %v1968 = vsel %vm1936, %v509, %v782
        %vm1969 = vcmask 64512
        %v1971 = vsel %vm1969, %v1938, %v881
        %v1973 = vsel %vm1969, %v1940, %v883
        %v1975 = vsel %vm1969, %v1942, %v885
        %v1977 = vsel %vm1969, %v1944, %v887
        %v1979 = vsel %vm1969, %v1946, %v889
        %v1981 = vsel %vm1969, %v1948, %v891
        %v1983 = vsel %vm1969, %v1950, %v893
        %v1985 = vsel %vm1969, %v1952, %v895
        %v1987 = vsel %vm1969, %v1954, %v897
        %v1989 = vsel %vm1969, %v1956, %v899
        %v1991 = vsel %vm1969, %v1958, %v901
        %v1993 = vsel %vm1969, %v1960, %v903
        %v1995 = vsel %vm1969, %v1962, %v905
        %v1997 = vsel %vm1969, %v1964, %v907
        %v1999 = vsel %vm1969, %v1966, %v909
        %v2001 = vsel %vm1969, %v1968, %v911
        %vm2002 = vcmask 97280
        %v2004 = vsel %vm2002, %v1971, %v993
        %v2006 = vsel %vm2002, %v1973, %v995
        %v2008 = vsel %vm2002, %v1975, %v997
        %v2010 = vsel %vm2002, %v1977, %v999
        %v2012 = vsel %vm2002, %v1979, %v1001
        %v2014 = vsel %vm2002, %v1981, %v1003
        %v2016 = vsel %vm2002, %v1983, %v1005
        %v2018 = vsel %vm2002, %v1985, %v1007
        %v2020 = vsel %vm2002, %v1987, %v1009
        %v2022 = vsel %vm2002, %v1989, %v1011
        %v2024 = vsel %vm2002, %v1991, %v1013
        %v2026 = vsel %vm2002, %v1993, %v1015
        %v2028 = vsel %vm2002, %v1995, %v1017
        %v2030 = vsel %vm2002, %v1997, %v1019
        %v2032 = vsel %vm2002, %v1999, %v1021
        %v2034 = vsel %vm2002, %v2001, %v1023
        %vm2035 = vcmask 130048
        %v2037 = vsel %vm2035, %v2004, %v1265
        %v2039 = vsel %vm2035, %v2006, %v1267
        %v2041 = vsel %vm2035, %v2008, %v1269
        %v2043 = vsel %vm2035, %v2010, %v1271
        %v2045 = vsel %vm2035, %v2012, %v1273
        %v2047 = vsel %vm2035, %v2014, %v1275
        %v2049 = vsel %vm2035, %v2016, %v1277
        %v2051 = vsel %vm2035, %v2018, %v1279
        %v2053 = vsel %vm2035, %v2020, %v1281
        %v2055 = vsel %vm2035, %v2022, %v1283
        %v2057 = vsel %vm2035, %v2024, %v1285
        %v2059 = vsel %vm2035, %v2026, %v1287
        %v2061 = vsel %vm2035, %v2028, %v1289
        %v2063 = vsel %vm2035, %v2030, %v1291
        %v2065 = vsel %vm2035, %v2032, %v1293
        %v2067 = vsel %vm2035, %v2034, %v1295
        %vm2068 = vcmask 162816
        %v2070 = vsel %vm2068, %v2037, %v1393
        %v2072 = vsel %vm2068, %v2039, %v1395
        %v2074 = vsel %vm2068, %v2041, %v1397
        %v2076 = vsel %vm2068, %v2043, %v1399
        %v2078 = vsel %vm2068, %v2045, %v1401
        %v2080 = vsel %vm2068, %v2047, %v1403
        %v2082 = vsel %vm2068, %v2049, %v1405
        %v2084 = vsel %vm2068, %v2051, %v1407
        %v2086 = vsel %vm2068, %v2053, %v1409
        %v2088 = vsel %vm2068, %v2055, %v1411
        %v2090 = vsel %vm2068, %v2057, %v1413
        %v2092 = vsel %vm2068, %v2059, %v1415
        %v2094 = vsel %vm2068, %v2061, %v1417
        %v2096 = vsel %vm2068, %v2063, %v1419
        %v2098 = vsel %vm2068, %v2065, %v1421
        %v2100 = vsel %vm2068, %v2067, %v1423
        %vm2101 = vcmask 195584
        %v2103 = vsel %vm2101, %v2070, %v1505
        %v2105 = vsel %vm2101, %v2072, %v1507
        %v2107 = vsel %vm2101, %v2074, %v1509
        %v2109 = vsel %vm2101, %v2076, %v1511
        %v2111 = vsel %vm2101, %v2078, %v1513
        %v2113 = vsel %vm2101, %v2080, %v1515
        %v2115 = vsel %vm2101, %v2082, %v1517
        %v2117 = vsel %vm2101, %v2084, %v1519
        %v2119 = vsel %vm2101, %v2086, %v1521
        %v2121 = vsel %vm2101, %v2088, %v1523
        %v2123 = vsel %vm2101, %v2090, %v1525
        %v2125 = vsel %vm2101, %v2092, %v1527
        %v2127 = vsel %vm2101, %v2094, %v1529
        %v2129 = vsel %vm2101, %v2096, %v1531
        %v2131 = vsel %vm2101, %v2098, %v1533
        %v2133 = vsel %vm2101, %v2100, %v1535
        %vm2134 = vcmask 228352
        %v2136 = vsel %vm2134, %v2103, %v1777
        %v2138 = vsel %vm2134, %v2105, %v1779
        %v2140 = vsel %vm2134, %v2107, %v1781
        %v2142 = vsel %vm2134, %v2109, %v1783
        %v2144 = vsel %vm2134, %v2111, %v1785
        %v2146 = vsel %vm2134, %v2113, %v1787
        %v2148 = vsel %vm2134, %v2115, %v1789
        %v2150 = vsel %vm2134, %v2117, %v1791
        %v2152 = vsel %vm2134, %v2119, %v1793
        %v2154 = vsel %vm2134, %v2121, %v1795
        %v2156 = vsel %vm2134, %v2123, %v1797
        %v2158 = vsel %vm2134, %v2125, %v1799
        %v2160 = vsel %vm2134, %v2127, %v1801
        %v2162 = vsel %vm2134, %v2129, %v1803
        %v2164 = vsel %vm2134, %v2131, %v1805
        %v2166 = vsel %vm2134, %v2133, %v1807
        %vm2167 = vcmask 261120
        %v2169 = vsel %vm2167, %v2136, %v1905
        %v2171 = vsel %vm2167, %v2138, %v1907
        %v2173 = vsel %vm2167, %v2140, %v1909
        %v2175 = vsel %vm2167, %v2142, %v1911
        %v2177 = vsel %vm2167, %v2144, %v1913
        %v2179 = vsel %vm2167, %v2146, %v1915
        %v2181 = vsel %vm2167, %v2148, %v1917
        %v2183 = vsel %vm2167, %v2150, %v1919
        %v2185 = vsel %vm2167, %v2152, %v1921
        %v2187 = vsel %vm2167, %v2154, %v1923
        %v2189 = vsel %vm2167, %v2156, %v1925
        %v2191 = vsel %vm2167, %v2158, %v1927
        %v2193 = vsel %vm2167, %v2160, %v1929
        %v2195 = vsel %vm2167, %v2162, %v1931
        %v2197 = vsel %vm2167, %v2164, %v1933
        %v2199 = vsel %vm2167, %v2166, %v1935
        %v2200 = vld [vmem:[%s219] sm:$0xf]
        %v2201 = vld [vmem:[%s219 + $0x4] sm:$0xf]
        %v2202 = vld [vmem:[%s219 + $0x8] sm:$0xf]
        %v2203 = vld [vmem:[%s219 + $0xc] sm:$0xf]
        %v2204 = vld [vmem:[%s219 + $0x10] sm:$0x3]
        %v2206 = vlaneseq
        %v2207 = vshrl.u32 %v2206, 7
        %v2208 = vsub.s32 0, %v2207
        %v2209 = vrot.slane %v225, %v2208
        %v2216 = vunpack.c.l.b16 %v2200
        %v2217 = vunpack.c.l.b16 %v2201
        %v2218 = vunpack.c.l.b16 %v2202
        %v2219 = vunpack.c.l.b16 %v2203
        %v2220 = vunpack.c.l.b16 %v2204
        %v2221 = vpack.c.b16 %v2217, %v2216
        %v2222 = vpack.c.b16 %v2219, %v2218
        %v2223 = vpack.c.b16 %v2220, %v2220
        %vm2226 = vcmask 293888
        %v2227 = vsel %vm2226, %v2169, 0
        %v2229 = vsel %vm2226, %v2171, 0
        %v2231 = vsel %vm2226, %v2173, 0
        %v2233 = vsel %vm2226, %v2175, 0
        %v2235 = vsel %vm2226, %v2177, 0
        %v2237 = vsel %vm2226, %v2179, 0
        %v2239 = vsel %vm2226, %v2181, 0
        %v2241 = vsel %vm2226, %v2183, 0
        %v2243 = vsel %vm2226, %v2185, 0
        %v2245 = vsel %vm2226, %v2187, 0
        %v2247 = vsel %vm2226, %v2189, 0
        %v2249 = vsel %vm2226, %v2191, 0
        %v2251 = vsel %vm2226, %v2193, 0
        %v2253 = vsel %vm2226, %v2195, 0
        %v2255 = vsel %vm2226, %v2197, 0
        %v2257 = vsel %vm2226, %v2199, 0
        %vm2259 = vcmask 1041408
        %v2261 = vsel %vm2259, %v2223, 0
        %2263 = vmatprep.subr.bf16.mxu0 0
        %2264 = vmatpush1.bf16.msra.mxu0 %v2221
        %2265 = vmatprep.subr.bf16.mxu0 0
        %2266 = vmatpush1.bf16.msra.mxu0 %v2222
        %2267 = vmatprep.subr.bf16.mxu0 0
        %2268 = vmatpush1.bf16.msra.mxu0 %v2261
        %2269 = vmatprep.subr.bf16.mxu0 0
        %2270 = vmatpush1.bf16.msra.mxu0 0
        %2271 = vmatprep.subr.bf16.mxu0 0
        %2272 = vmatpush1.bf16.msra.mxu0 0
        %2273 = vmatprep.subr.bf16.mxu0 0
        %2274 = vmatpush1.bf16.msra.mxu0 0
        %2275 = vmatprep.subr.bf16.mxu0 0
        %2276 = vmatpush1.bf16.msra.mxu0 0
        %2277 = vmatprep.subr.bf16.mxu0 0
        %2278 = vmatpush1.bf16.msra.mxu0 0
        %2279 = vmatprep.subr.bf16.mxu0 0
        %2280 = vmatpush1.bf16.msra.mxu0 0
        %2281 = vmatprep.subr.bf16.mxu0 0
        %2282 = vmatpush1.bf16.msra.mxu0 0
        %2283 = vmatprep.subr.bf16.mxu0 0
        %2284 = vmatpush1.bf16.msra.mxu0 0
        %2285 = vmatprep.subr.bf16.mxu0 0
        %2286 = vmatpush1.bf16.msra.mxu0 0
        %2287 = vmatprep.subr.bf16.mxu0 0
        %2288 = vmatpush1.bf16.msra.mxu0 0
        %2289 = vmatprep.subr.bf16.mxu0 0
        %2290 = vmatpush1.bf16.msra.mxu0 0
        %2291 = vmatprep.subr.bf16.mxu0 0
        %2292 = vmatpush1.bf16.msra.mxu0 0
        %2293 = vmatprep.subr.bf16.mxu0 0
        %2294 = vmatpush1.bf16.msra.mxu0 0
        %2295 = vmatprep.mubr.bf16.mxu0 0
        %2296 = vmatmul.mubr.bf16.gmra.mrb[0].mxu0 %v2227
        %v2297 = vpop.f32.mrb[0].mxu0
        %v2298 = vadd.f32 %v2209, %v2297
        %v2299 = vpop.f32.mrb[0].mxu0
        %v2300 = vpop.f32.mrb[0].mxu0
        %v2301 = vadd.f32 %v2209, %v2300
        %v2302 = vpop.f32.mrb[0].mxu0
        %2303 = vmatprep.mubr.bf16.mxu0 0
        %2304 = vmatmul.mubr.bf16.gmra.mrb[0].mxu0 %v2229
        %v2305 = vpop.f32.mrb[0].mxu0
        %v2306 = vadd.f32 %v2209, %v2305
        %v2307 = vpop.f32.mrb[0].mxu0
        %v2308 = vpop.f32.mrb[0].mxu0
        %v2309 = vadd.f32 %v2209, %v2308
        %v2310 = vpop.f32.mrb[0].mxu0
        %2311 = vmatprep.mubr.bf16.mxu0 0
        %2312 = vmatmul.mubr.bf16.gmra.mrb[0].mxu0 %v2231
        %v2313 = vpop.f32.mrb[0].mxu0
        %v2314 = vadd.f32 %v2209, %v2313
        %v2315 = vpop.f32.mrb[0].mxu0
        %v2316 = vpop.f32.mrb[0].mxu0
        %v2317 = vadd.f32 %v2209, %v2316
        %v2318 = vpop.f32.mrb[0].mxu0
        %2319 = vmatprep.mubr.bf16.mxu0 0
        %2320 = vmatmul.mubr.bf16.gmra.mrb[0].mxu0 %v2233
        %v2321 = vpop.f32.mrb[0].mxu0
        %v2322 = vadd.f32 %v2209, %v2321
        %v2323 = vpop.f32.mrb[0].mxu0
        %v2324 = vpop.f32.mrb[0].mxu0
        %v2325 = vadd.f32 %v2209, %v2324
        %v2326 = vpop.f32.mrb[0].mxu0
        %2327 = vmatprep.mubr.bf16.mxu0 0
        %2328 = vmatmul.mubr.bf16.gmra.mrb[0].mxu0 %v2235
        %v2329 = vpop.f32.mrb[0].mxu0
        %v2330 = vadd.f32 %v2209, %v2329
        %v2331 = vpop.f32.mrb[0].mxu0
        %v2332 = vpop.f32.mrb[0].mxu0
        %v2333 = vadd.f32 %v2209, %v2332
        %v2334 = vpop.f32.mrb[0].mxu0
        %2335 = vmatprep.mubr.bf16.mxu0 0
        %2336 = vmatmul.mubr.bf16.gmra.mrb[0].mxu0 %v2237
        %v2337 = vpop.f32.mrb[0].mxu0
        %v2338 = vadd.f32 %v2209, %v2337
        %v2339 = vpop.f32.mrb[0].mxu0
        %v2340 = vpop.f32.mrb[0].mxu0
        %v2341 = vadd.f32 %v2209, %v2340
        %v2342 = vpop.f32.mrb[0].mxu0
        %2343 = vmatprep.mubr.bf16.mxu0 0
        %2344 = vmatmul.mubr.bf16.gmra.mrb[0].mxu0 %v2239
        %v2345 = vpop.f32.mrb[0].mxu0
        %v2346 = vadd.f32 %v2209, %v2345
        %v2347 = vpop.f32.mrb[0].mxu0
        %v2348 = vpop.f32.mrb[0].mxu0
        %v2349 = vadd.f32 %v2209, %v2348
        %v2350 = vpop.f32.mrb[0].mxu0
        %2351 = vmatprep.mubr.bf16.mxu0 0
        %2352 = vmatmul.mubr.bf16.gmra.mrb[0].mxu0 %v2241
        %v2353 = vpop.f32.mrb[0].mxu0
        %v2354 = vadd.f32 %v2209, %v2353
        %v2355 = vpop.f32.mrb[0].mxu0
        %v2356 = vpop.f32.mrb[0].mxu0
        %v2357 = vadd.f32 %v2209, %v2356
        %v2358 = vpop.f32.mrb[0].mxu0
        %2359 = vmatprep.mubr.bf16.mxu0 0
        %2360 = vmatmul.mubr.bf16.gmra.mrb[0].mxu0 %v2243
        %v2361 = vpop.f32.mrb[0].mxu0
        %v2362 = vadd.f32 %v2209, %v2361
        %v2363 = vpop.f32.mrb[0].mxu0
        %v2364 = vpop.f32.mrb[0].mxu0
        %v2365 = vadd.f32 %v2209, %v2364
        %v2366 = vpop.f32.mrb[0].mxu0
        %2367 = vmatprep.mubr.bf16.mxu0 0
        %2368 = vmatmul.mubr.bf16.gmra.mrb[0].mxu0 %v2245
        %v2369 = vpop.f32.mrb[0].mxu0
        %v2370 = vadd.f32 %v2209, %v2369
        %v2371 = vpop.f32.mrb[0].mxu0
        %v2372 = vpop.f32.mrb[0].mxu0
        %v2373 = vadd.f32 %v2209, %v2372
        %v2374 = vpop.f32.mrb[0].mxu0
        %2375 = vmatprep.mubr.bf16.mxu0 0
        %2376 = vmatmul.mubr.bf16.gmra.mrb[0].mxu0 %v2247
        %v2377 = vpop.f32.mrb[0].mxu0
        %v2378 = vadd.f32 %v2209, %v2377
        %v2379 = vpop.f32.mrb[0].mxu0
        %v2380 = vpop.f32.mrb[0].mxu0
        %v2381 = vadd.f32 %v2209, %v2380
        %v2382 = vpop.f32.mrb[0].mxu0
        %2383 = vmatprep.mubr.bf16.mxu0 0
        %2384 = vmatmul.mubr.bf16.gmra.mrb[0].mxu0 %v2249
        %v2385 = vpop.f32.mrb[0].mxu0
        %v2386 = vadd.f32 %v2209, %v2385
        %v2387 = vpop.f32.mrb[0].mxu0
        %v2388 = vpop.f32.mrb[0].mxu0
        %v2389 = vadd.f32 %v2209, %v2388
        %v2390 = vpop.f32.mrb[0].mxu0
        %2391 = vmatprep.mubr.bf16.mxu0 0
        %2392 = vmatmul.mubr.bf16.gmra.mrb[0].mxu0 %v2251
        %v2393 = vpop.f32.mrb[0].mxu0
        %v2394 = vadd.f32 %v2209, %v2393
        %v2395 = vpop.f32.mrb[0].mxu0
        %v2396 = vpop.f32.mrb[0].mxu0
        %v2397 = vadd.f32 %v2209, %v2396
        %v2398 = vpop.f32.mrb[0].mxu0
        %2399 = vmatprep.mubr.bf16.mxu0 0
        %2400 = vmatmul.mubr.bf16.gmra.mrb[0].mxu0 %v2253
        %v2401 = vpop.f32.mrb[0].mxu0
        %v2402 = vadd.f32 %v2209, %v2401
        %v2403 = vpop.f32.mrb[0].mxu0
        %v2404 = vpop.f32.mrb[0].mxu0
        %v2405 = vadd.f32 %v2209, %v2404
        %v2406 = vpop.f32.mrb[0].mxu0
        %2407 = vmatprep.mubr.bf16.mxu0 0
        %2408 = vmatmul.mubr.bf16.gmra.mrb[0].mxu0 %v2255
        %v2409 = vpop.f32.mrb[0].mxu0
        %v2410 = vadd.f32 %v2209, %v2409
        %v2411 = vpop.f32.mrb[0].mxu0
        %v2412 = vpop.f32.mrb[0].mxu0
        %v2413 = vadd.f32 %v2209, %v2412
        %v2414 = vpop.f32.mrb[0].mxu0
        %2415 = vmatprep.mubr.bf16.mxu0 0
        %2416 = vmatmul.mubr.bf16.gmra.mrb[0].mxu0 %v2257
        %v2417 = vpop.f32.mrb[0].mxu0
        %v2418 = vadd.f32 %v2209, %v2417
        %v2419 = vpop.f32.mrb[0].mxu0
        %v2420 = vpop.f32.mrb[0].mxu0
        %v2421 = vadd.f32 %v2209, %v2420
        %v2422 = vpop.f32.mrb[0].mxu0
        %2423 = vdwg.mxu0
        %v2424 = vmax.f32 %v2298, 0.0
        %v2425 = vmax.f32 %v2301, 0.0
        %v2426 = vmax.f32 %v2306, 0.0
        %v2427 = vmax.f32 %v2309, 0.0
        %v2428 = vmax.f32 %v2314, 0.0
        %v2429 = vmax.f32 %v2317, 0.0
        %v2430 = vmax.f32 %v2322, 0.0
        %v2431 = vmax.f32 %v2325, 0.0
        %v2432 = vmax.f32 %v2330, 0.0
        %v2433 = vmax.f32 %v2333, 0.0
        %v2434 = vmax.f32 %v2338, 0.0
        %v2435 = vmax.f32 %v2341, 0.0
        %v2436 = vmax.f32 %v2346, 0.0
        %v2437 = vmax.f32 %v2349, 0.0
        %v2438 = vmax.f32 %v2354, 0.0
        %v2439 = vmax.f32 %v2357, 0.0
        %v2440 = vmax.f32 %v2362, 0.0
        %v2441 = vmax.f32 %v2365, 0.0
        %v2442 = vmax.f32 %v2370, 0.0
        %v2443 = vmax.f32 %v2373, 0.0
        %v2444 = vmax.f32 %v2378, 0.0
        %v2445 = vmax.f32 %v2381, 0.0
        %v2446 = vmax.f32 %v2386, 0.0
        %v2447 = vmax.f32 %v2389, 0.0
        %v2448 = vmax.f32 %v2394, 0.0
        %v2449 = vmax.f32 %v2397, 0.0
        %v2450 = vmax.f32 %v2402, 0.0
        %v2451 = vmax.f32 %v2405, 0.0
        %v2452 = vmax.f32 %v2410, 0.0
        %v2453 = vmax.f32 %v2413, 0.0
        %v2454 = vmax.f32 %v2418, 0.0
        %v2455 = vmax.f32 %v2421, 0.0
        %2456 = vst [vmem:[%s210] sm:$0xff] %v2424
        %2457 = vst [vmem:[%s210 + $0x8] sm:$0xff] %v2425
        %2458 = vst [vmem:[%s210 + $0x10] sm:$0xff] %v2426
        %2459 = vst [vmem:[%s210 + $0x18] sm:$0xff] %v2427
        %2460 = vst [vmem:[%s210 + $0x20] sm:$0xff] %v2428
        %2461 = vst [vmem:[%s210 + $0x28] sm:$0xff] %v2429
        %2462 = vst [vmem:[%s210 + $0x30] sm:$0xff] %v2430
        %2463 = vst [vmem:[%s210 + $0x38] sm:$0xff] %v2431
        %2464 = vst [vmem:[%s210 + $0x40] sm:$0xff] %v2432
        %2465 = vst [vmem:[%s210 + $0x48] sm:$0xff] %v2433
        %2466 = vst [vmem:[%s210 + $0x50] sm:$0xff] %v2434
        %2467 = vst [vmem:[%s210 + $0x58] sm:$0xff] %v2435
        %2468 = vst [vmem:[%s210 + $0x60] sm:$0xff] %v2436
        %2469 = vst [vmem:[%s210 + $0x68] sm:$0xff] %v2437
        %2470 = vst [vmem:[%s210 + $0x70] sm:$0xff] %v2438
        %2471 = vst [vmem:[%s210 + $0x78] sm:$0xff] %v2439
        %2472 = vst [vmem:[%s210 + $0x80] sm:$0xff] %v2440
        %2473 = vst [vmem:[%s210 + $0x88] sm:$0xff] %v2441
        %2474 = vst [vmem:[%s210 + $0x90] sm:$0xff] %v2442
        %2475 = vst [vmem:[%s210 + $0x98] sm:$0xff] %v2443
        %2476 = vst [vmem:[%s210 + $0xa0] sm:$0xff] %v2444
        %2477 = vst [vmem:[%s210 + $0xa8] sm:$0xff] %v2445
        %2478 = vst [vmem:[%s210 + $0xb0] sm:$0xff] %v2446
        %2479 = vst [vmem:[%s210 + $0xb8] sm:$0xff] %v2447
        %2480 = vst [vmem:[%s210 + $0xc0] sm:$0xff] %v2448
        %2481 = vst [vmem:[%s210 + $0xc8] sm:$0xff] %v2449
        %2482 = vst [vmem:[%s210 + $0xd0] sm:$0xff] %v2450
        %2483 = vst [vmem:[%s210 + $0xd8] sm:$0xff] %v2451
        %2484 = vst [vmem:[%s210 + $0xe0] sm:$0xff] %v2452
        %2485 = vst [vmem:[%s210 + $0xe8] sm:$0xff] %v2453
        %2486 = vst [vmem:[%s210 + $0xf0] sm:$0xff] %v2454
        %2487 = vst [vmem:[%s210 + $0xf8] sm:$0xff] %v2455
        %s2488 = sand.u32 %s126, 1
        %s2489 = scalar_lea.sflag [#allocation3], %s2488
        %s2490 = sand.u32 %s126, 1
        %s2491 = smul.addr %s2490, 256
        %s2492 = scalar_lea.vmem [#allocation2], %s2491
        // Predicated region
        $region33: #{tpu_custom_call.1} parent=31 // pred_check
          %p2493 = pneg %p136
        $region34: #{tpu_custom_call.1} parent=31 // pred_check_branch
          %2495 = sbr.rel (%p2493) target = $region36
        $region35: #{tpu_custom_call.1} parent=31 // pred_region
          %s2496 = smul.u32 16, %s24
          %s2498 = ssub.s32 4096, 4096
          %2499 = vsyncadd %s2489, %s2498
          %s2500 = smul.addr %s2496, 2
          %s2501 = sadd.s32 %s23, %s2500
          %s2502 = smul.addr %s22, 32
          %s2503 = sadd.s32 %s2501, %s2502
          %s2504 = smul.addr %s2503, 128
          %s2505 = scalar_lea.hbm %s3, %s2504
          %s2506 = sshll.u32 %s2492, 4
          %s2507 = int_to_ptr.vmem [resolvable:$true] %s2506
          %2512 = dma.vmem_to_hbm [thread:$0]  %s2507, 4096, %s2505, %s2489, 128, 128, 8
        $region36: #{tpu_custom_call.1} parent=31 // pred_fallthru
          _
      $region32: #{tpu_custom_call.1} parent=5 // pred_fallthru
        _
      %p2513 = scmp.le.s32.totalorder 2, %s12
      // Predicated region
      $region37: #{tpu_custom_call.1} parent=5 // pred_check
        %p2514 = pneg %p2513
      $region38: #{tpu_custom_call.1} parent=5 // pred_check_branch
        %2516 = sbr.rel (%p2514) target = $region40
      $region39: #{tpu_custom_call.1} parent=5 // pred_region
        %s2517 = ssub.s32 %s12, 2
        // Predicated region
        $region41: #{tpu_custom_call.1} parent=39 // pred_check
          %p2518 = pneg %p142
        $region42: #{tpu_custom_call.1} parent=39 // pred_check_branch
          %2520 = sbr.rel (%p2518) target = $region44
        $region43: #{tpu_custom_call.1} parent=39 // pred_region
          %s2521 = sand.u32 %s127, 1
          %s2522 = scalar_lea.sflag [#allocation3], %s2521
          %s2523 = sand.u32 %s127, 1
          %s2524 = smul.addr %s2523, 256
          %s2525 = scalar_lea.vmem [#allocation2], %s2524
          %2526 = dma.done %s2522, 4096
        $region44: #{tpu_custom_call.1} parent=39 // pred_fallthru
          _
      $region40: #{tpu_custom_call.1} parent=5 // pred_fallthru
        _
    $region6: #{tpu_custom_call.1} parent=1 // loop_footer
      %s16 = sadd.s32 1, %s12
    $region7: #{tpu_custom_call.1} parent=1 // loop_footer_branch
      %11 = sbr.rel target = $region3
    $region8: #{tpu_custom_call.1} parent=1 // loop_exit
      _
    %2527 = vsyncpa [#allocation3], 1
    %s2528 = scalar_lea.sflag [#allocation3], 1
    %2529 = vsyncpa %s2528, 1

</llo_original>
